<compile_context>
chip_gen: v6e
topology: v6e:2x2x1
jax: 0.10.0
libtpu: 0.0.40
codegen_flags: <defaults>
</compile_context>

<pallas_src>
import jax
import jax.numpy as jnp
from jax.experimental import pallas as pl
from jax.experimental.pallas import tpu as pltpu

TM = 256          # masked rows per grid step (multiple of 8)
LANE = 128        # TPU lane width; output / weight columns are padded to this
_ISSUE_UNROLL = 8  # static unroll factor for the row-gather issue loop


def _round_up(x, m):
    return (x + m - 1) // m * m


def sgc_linear_gather_kernel(idx_ref, h_hbm, w_ref, b_ref, o_ref, x_buf, copy_sem):
    """One grid step: gather TM rows of cached_h (double-buffered), y = x @ W^T + b.

    idx_ref : SMEM (M_pad,) int32       -- scalar-prefetched mask indices
    h_hbm   : ANY  (N, in_feats) f32    -- cached_h, stays in HBM
    w_ref   : VMEM (in_feats, out_p) bf16 (pre-transposed, zero-padded)
    b_ref   : VMEM (1, out_p) f32
    o_ref   : VMEM (tm, out_p) f32
    x_buf   : VMEM (2, tm, in_feats) f32 scratch (double-buffered gather dest)
    copy_sem: DMA semaphores (2,)
    """
    tm = x_buf.shape[1]
    i = pl.program_id(0)
    nsteps = pl.num_programs(0)
    slot = i % 2

    def issue_gather(step, slot_):
        base = step * tm

        # Unrolled-by-8 issue loop: 8 static descriptor starts per scf.for iter.
        @pl.loop(0, tm, step=_ISSUE_UNROLL)
        def _start(r0):
            for u in range(_ISSUE_UNROLL):
                r = r0 + u
                row = idx_ref[base + r]
                pltpu.make_async_copy(
                    h_hbm.at[pl.ds(row, 1), :],
                    x_buf.at[slot_, pl.ds(r, 1), :],
                    copy_sem.at[slot_],
                ).start()

    # Prime the pipeline: first step gathers its own rows into slot 0.
    @pl.when(i == 0)
    def _prime():
        issue_gather(0, 0)

    # Aggregated drain: one descriptor spanning the whole slot.  The tm
    # equal-size row copies each signal in_feats*4 bytes, summing exactly to
    # this descriptor's size, so the byte-counting DMA semaphore balances.
    pltpu.make_async_copy(
        h_hbm.at[pl.ds(0, tm), :], x_buf.at[slot], copy_sem.at[slot]
    ).wait()

    # Prefetch next step's rows into the other slot; hides HBM random-read
    # latency behind this step's matmul + output writeback.
    @pl.when(i + 1 < nsteps)
    def _prefetch_next():
        issue_gather(i + 1, 1 - slot)

    # bf16 MXU matmul with f32 accumulation, exactly nn.Linear: x @ W^T + b.
    x = x_buf[slot].astype(jnp.bfloat16)
    acc = jnp.dot(x, w_ref[...], preferred_element_type=jnp.float32)
    o_ref[...] = (acc + b_ref[...]).astype(o_ref.dtype)


def sgc_forward(cached_h, mask_idx, weight, bias, *, tm=TM):
    """Forward pass of SGCLayer: Linear(cached_h[mask])."""
    n, in_feats = cached_h.shape
    out_feats = weight.shape[0]
    m = int(mask_idx.shape[0])

    if m == 0:  # zero-extent grid guard
        return jnp.zeros((0, out_feats), cached_h.dtype)

    # Lane-dense output: pad out_feats to a multiple of 128 with zero columns.
    out_p = _round_up(out_feats, LANE)

    # Row tile: multiple of 8, no larger than the (8-padded) masked row count.
    tm = min(tm, _round_up(m, 8))
    # Ensure >= 2 grid steps whenever possible so the cross-step gather
    # prefetch actually overlaps with compute.
    if m > 8 and _round_up(m, tm) // tm < 2:
        tm = _round_up(-(-m // 2), 8)
    tm = _round_up(tm, 8)
    m_pad = _round_up(m, tm)
    grid_steps = m_pad // tm
    # The aggregated-wait descriptor slices tm rows of cached_h; a node mask
    # always satisfies this for realistic graphs.
    assert tm <= n, (tm, n)

    # Pad the index list with 0 (valid row); the extra output rows are sliced off.
    idx = jnp.zeros((m_pad,), jnp.int32).at[:m].set(mask_idx.astype(jnp.int32))
    w_t = (
        jnp.zeros((in_feats, out_p), jnp.bfloat16)
        .at[:, :out_feats]
        .set(weight.T.astype(jnp.bfloat16))
    )
    b2 = (
        jnp.zeros((1, out_p), jnp.float32)
        .at[:, :out_feats]
        .set(bias.astype(jnp.float32)[None, :])
    )

    # VMEM budget: ~2x the real tile footprint, capped by the actual chip VMEM
    # minus headroom (<= ~40 MiB on v7x's 64 MiB/TC, up to 96 MiB on 128 MiB chips).
    try:
        vmem_cap = int(pltpu.get_tpu_info().vmem_capacity_bytes)
    except Exception:  # off-TPU trace / older runtime: assume smallest (v7x per-TC)
        vmem_cap = 64 << 20
    cap = min(max(vmem_cap - (24 << 20), 16 << 20), 96 << 20)

    est = (2 * tm * out_p * 4            # output blocks (f32, double-buffered)
           + 2 * in_feats * out_p * 2    # W^T blocks (bf16)
           + 2 * 8 * out_p * 4           # bias blocks (f32, sublane-padded)
           + 2 * tm * in_feats * 4)      # double-buffered gather scratch (f32)
    vmem_limit = int(min(max(2 * est, 16 << 20), cap))

    out = pl.pallas_call(
        sgc_linear_gather_kernel,
        out_shape=jax.ShapeDtypeStruct((m_pad, out_p), cached_h.dtype),
        grid_spec=pltpu.PrefetchScalarGridSpec(
            num_scalar_prefetch=1,                     # mask indices -> SMEM
            grid=(grid_steps,),
            in_specs=[
                pl.BlockSpec(memory_space=pl.ANY),     # cached_h stays in HBM
                pl.BlockSpec((in_feats, out_p), lambda i, idx_ref: (0, 0)),
                pl.BlockSpec((1, out_p), lambda i, idx_ref: (0, 0)),
            ],
            out_specs=pl.BlockSpec((tm, out_p), lambda i, idx_ref: (i, 0)),
            scratch_shapes=[
                pltpu.VMEM((2, tm, in_feats), cached_h.dtype),  # gather buffers
                pltpu.SemaphoreType.DMA((2,)),
            ],
        ),
        compiler_params=pltpu.CompilerParams(
            # The manual cross-step gather pipeline carries VMEM/semaphore state
            # across grid steps, so the axis must run sequentially on one core.
            dimension_semantics=("arbitrary",),
            vmem_limit_bytes=vmem_limit,
        ),
    )(idx, cached_h, w_t, b2)

    return out[:m, :out_feats]


def sgc_precompute(adj, h, K):
    """__init__-time precompute (plain JAX setup mirroring the DGL message passing)."""
    # TODO(synk): DGL's sparse update_all is emulated with a dense adjacency
    # matmul here (one-time init cost, not part of the Pallas forward path).
    deg = adj.sum(axis=1)
    norm = jnp.where(deg > 0, jax.lax.rsqrt(deg), 0.0)[:, None]  # deg^-1/2
    for _ in range(K):
        h = h * norm
        h = adj.T @ h            # copy_src(src='h') + sum over incoming neighbors
        h = h * norm
    mean = h.mean(axis=0)
    std = h.std(axis=0, ddof=1)  # torch .std() default is unbiased (ddof=1)
    return (h - mean) / std


if __name__ == "__main__":
    key = jax.random.PRNGKey(0)
    k_adj, k_h, k_w, k_b, k_mask = jax.random.split(key, 5)

    # Small demo shapes (enough rows for a 2-step grid with TM=256 so the
    # cross-step prefetch path is exercised).
    N, in_feats, out_feats, K, M = 512, 128, 32, 2, 384

    # Deterministic synthetic symmetric graph with self loops.
    a = (jax.random.uniform(k_adj, (N, N)) < 0.02).astype(jnp.float32)
    adj = jnp.maximum(a, a.T)
    adj = jnp.maximum(adj, jnp.eye(N, dtype=jnp.float32))

    h0 = jax.random.normal(k_h, (N, in_feats), dtype=jnp.float32)
    cached_h = sgc_precompute(adj, h0, K)

    # nn.Linear(in_feats, out_feats, bias=True) default init: U(-1/sqrt(in), 1/sqrt(in))
    bound = 1.0 / (in_feats ** 0.5)
    weight = jax.random.uniform(k_w, (out_feats, in_feats), jnp.float32, -bound, bound)
    bias = jax.random.uniform(k_b, (out_feats,), jnp.float32, -bound, bound)

    # Mask selecting M nodes (index form of the PyTorch boolean/index mask).
    mask_idx = jax.random.permutation(k_mask, N)[:M]

    fwd = jax.jit(sgc_forward)
    out = jax.block_until_ready(fwd(cached_h, mask_idx, weight, bias))

    # Correctness vs the plain-JAX f32 reference of the torch forward
    # (kernel matmul runs in bf16 with f32 accumulation -> loosened tolerance).
    ref = cached_h[mask_idx] @ weight.T + bias
    assert out.shape == (M, out_feats), out.shape
    max_err = float(jnp.abs(out - ref).max())
    assert jnp.allclose(out, ref, atol=5e-2, rtol=5e-2), max_err

    print("KERNEL_OK")
</pallas_src>

<mosaic_0001>
module attributes {stable_mosaic.version = 11 : i64} {
  func.func @sgc_linear_gather_kernel(%arg0: i32, %arg1: memref<512xi32, #tpu.memory_space<smem>>, %arg2: memref<512x128xf32, #tpu.memory_space<any>>, %arg3: memref<128x128xbf16, #tpu.memory_space<vmem>>, %arg4: memref<1x128xf32, #tpu.memory_space<vmem>>, %arg5: memref<256x128xf32, #tpu.memory_space<vmem>>, %arg6: memref<2x256x128xf32, #tpu.memory_space<vmem>>, %arg7: memref<2x!tpu.dma_semaphore, #tpu.memory_space<semaphore_mem>>) attributes {dimension_semantics = [#tpu.dimension_semantics<arbitrary>], iteration_bounds = array<i64: 2>, scalar_prefetch = 1 : i64, scratch_operands = 2 : i64, tpu.core_type = #tpu.core_type<tc>, window_params = [{}, {pipeline_mode = #tpu.pipeline_mode<synchronous>, transform_indices = @transform_1, window_bounds = array<i64: 128, 128>}, {pipeline_mode = #tpu.pipeline_mode<synchronous>, transform_indices = @transform_2, window_bounds = array<i64: 1, 128>}, {transform_indices = @transform_3, window_bounds = array<i64: 256, 128>}]} {
    %c2_i32 = arith.constant 2 : i32
    %c0_i32 = arith.constant 0 : i32
    %0 = arith.cmpi eq, %c2_i32, %c0_i32 : i32
    %c1_i32 = arith.constant 1 : i32
    %1 = arith.select %0, %c1_i32, %c2_i32 : i32
    %2 = arith.remsi %arg0, %1 : i32
    %c0_i32_0 = arith.constant 0 : i32
    %3 = arith.cmpi ne, %2, %c0_i32_0 : i32
    %c0_i32_1 = arith.constant 0 : i32
    %4 = arith.cmpi slt, %2, %c0_i32_1 : i32
    %c0_i32_2 = arith.constant 0 : i32
    %5 = arith.cmpi slt, %1, %c0_i32_2 : i32
    %6 = arith.xori %4, %5 : i1
    %7 = arith.andi %6, %3 : i1
    %8 = arith.addi %2, %1 : i32
    %9 = arith.select %7, %8, %2 : i32
    %c0_i32_3 = arith.constant 0 : i32
    %10 = arith.cmpi eq, %arg0, %c0_i32_3 : i32
    %11 = arith.extui %10 : i1 to i32
    %c0_i32_4 = arith.constant 0 : i32
    %12 = arith.cmpi ne, %11, %c0_i32_4 : i32
    scf.if %12 {
      %c0_i32_19 = arith.constant 0 : i32
      %c32_i32 = arith.constant 32 : i32
      %32 = arith.addi %c0_i32_19, %c32_i32 : i32
      %c1_i32_20 = arith.constant 1 : i32
      scf.for %arg8 = %c0_i32_19 to %32 step %c1_i32_20  : i32 {
        %c8_i32 = arith.constant 8 : i32
        %33 = arith.muli %arg8, %c8_i32 : i32
        %c0_i32_22 = arith.constant 0 : i32
        %34 = arith.addi %c0_i32_22, %33 : i32
        %c0_i32_23 = arith.constant 0 : i32
        %35 = arith.addi %34, %c0_i32_23 : i32
        %c0_i32_24 = arith.constant 0 : i32
        %36 = arith.addi %c0_i32_24, %35 : i32
        %37 = arith.index_cast %36 : i32 to index
        %38 = memref.load %arg1[%37] : memref<512xi32, #tpu.memory_space<smem>>
        %c0_i32_25 = arith.constant 0 : i32
        %c0_i32_26 = arith.constant 0 : i32
        %c0_i32_27 = arith.constant 0 : i32
        %39 = tpu.memref_slice %arg2[%38, %c0_i32_27] : memref<512x128xf32, #tpu.memory_space<any>> -> memref<1x128xf32, #tpu.memory_space<any>>
        %c0_i32_28 = arith.constant 0 : i32
        %40 = tpu.memref_slice %arg6[%c0_i32_25, %35, %c0_i32_28] : memref<2x256x128xf32, #tpu.memory_space<vmem>> -> memref<1x1x128xf32, #tpu.memory_space<vmem>>
        %41 = tpu.memref_squeeze %40 : memref<1x1x128xf32, #tpu.memory_space<vmem>> -> memref<1x128xf32, #tpu.memory_space<vmem>>
        %42 = tpu.memref_slice %arg7[%c0_i32_26] : memref<2x!tpu.dma_semaphore, #tpu.memory_space<semaphore_mem>> -> memref<1x!tpu.dma_semaphore, #tpu.memory_space<semaphore_mem>>
        %43 = tpu.memref_squeeze %42 : memref<1x!tpu.dma_semaphore, #tpu.memory_space<semaphore_mem>> -> memref<!tpu.dma_semaphore, #tpu.memory_space<semaphore_mem>>
        tpu.enqueue_dma source(%39 : memref<1x128xf32, #tpu.memory_space<any>>) target(%41 : memref<1x128xf32, #tpu.memory_space<vmem>>) target_semaphore(%43 : memref<!tpu.dma_semaphore, #tpu.memory_space<semaphore_mem>>)
        %c1_i32_29 = arith.constant 1 : i32
        %44 = arith.addi %34, %c1_i32_29 : i32
        %c0_i32_30 = arith.constant 0 : i32
        %45 = arith.addi %c0_i32_30, %44 : i32
        %46 = arith.index_cast %45 : i32 to index
        %47 = memref.load %arg1[%46] : memref<512xi32, #tpu.memory_space<smem>>
        %c0_i32_31 = arith.constant 0 : i32
        %c0_i32_32 = arith.constant 0 : i32
        %c0_i32_33 = arith.constant 0 : i32
        %48 = tpu.memref_slice %arg2[%47, %c0_i32_33] : memref<512x128xf32, #tpu.memory_space<any>> -> memref<1x128xf32, #tpu.memory_space<any>>
        %c0_i32_34 = arith.constant 0 : i32
        %49 = tpu.memref_slice %arg6[%c0_i32_31, %44, %c0_i32_34] : memref<2x256x128xf32, #tpu.memory_space<vmem>> -> memref<1x1x128xf32, #tpu.memory_space<vmem>>
        %50 = tpu.memref_squeeze %49 : memref<1x1x128xf32, #tpu.memory_space<vmem>> -> memref<1x128xf32, #tpu.memory_space<vmem>>
        %51 = tpu.memref_slice %arg7[%c0_i32_32] : memref<2x!tpu.dma_semaphore, #tpu.memory_space<semaphore_mem>> -> memref<1x!tpu.dma_semaphore, #tpu.memory_space<semaphore_mem>>
        %52 = tpu.memref_squeeze %51 : memref<1x!tpu.dma_semaphore, #tpu.memory_space<semaphore_mem>> -> memref<!tpu.dma_semaphore, #tpu.memory_space<semaphore_mem>>
        tpu.enqueue_dma source(%48 : memref<1x128xf32, #tpu.memory_space<any>>) target(%50 : memref<1x128xf32, #tpu.memory_space<vmem>>) target_semaphore(%52 : memref<!tpu.dma_semaphore, #tpu.memory_space<semaphore_mem>>)
        %c2_i32_35 = arith.constant 2 : i32
        %53 = arith.addi %34, %c2_i32_35 : i32
        %c0_i32_36 = arith.constant 0 : i32
        %54 = arith.addi %c0_i32_36, %53 : i32
        %55 = arith.index_cast %54 : i32 to index
        %56 = memref.load %arg1[%55] : memref<512xi32, #tpu.memory_space<smem>>
        %c0_i32_37 = arith.constant 0 : i32
        %c0_i32_38 = arith.constant 0 : i32
        %c0_i32_39 = arith.constant 0 : i32
        %57 = tpu.memref_slice %arg2[%56, %c0_i32_39] : memref<512x128xf32, #tpu.memory_space<any>> -> memref<1x128xf32, #tpu.memory_space<any>>
        %c0_i32_40 = arith.constant 0 : i32
        %58 = tpu.memref_slice %arg6[%c0_i32_37, %53, %c0_i32_40] : memref<2x256x128xf32, #tpu.memory_space<vmem>> -> memref<1x1x128xf32, #tpu.memory_space<vmem>>
        %59 = tpu.memref_squeeze %58 : memref<1x1x128xf32, #tpu.memory_space<vmem>> -> memref<1x128xf32, #tpu.memory_space<vmem>>
        %60 = tpu.memref_slice %arg7[%c0_i32_38] : memref<2x!tpu.dma_semaphore, #tpu.memory_space<semaphore_mem>> -> memref<1x!tpu.dma_semaphore, #tpu.memory_space<semaphore_mem>>
        %61 = tpu.memref_squeeze %60 : memref<1x!tpu.dma_semaphore, #tpu.memory_space<semaphore_mem>> -> memref<!tpu.dma_semaphore, #tpu.memory_space<semaphore_mem>>
        tpu.enqueue_dma source(%57 : memref<1x128xf32, #tpu.memory_space<any>>) target(%59 : memref<1x128xf32, #tpu.memory_space<vmem>>) target_semaphore(%61 : memref<!tpu.dma_semaphore, #tpu.memory_space<semaphore_mem>>)
        %c3_i32 = arith.constant 3 : i32
        %62 = arith.addi %34, %c3_i32 : i32
        %c0_i32_41 = arith.constant 0 : i32
        %63 = arith.addi %c0_i32_41, %62 : i32
        %64 = arith.index_cast %63 : i32 to index
        %65 = memref.load %arg1[%64] : memref<512xi32, #tpu.memory_space<smem>>
        %c0_i32_42 = arith.constant 0 : i32
        %c0_i32_43 = arith.constant 0 : i32
        %c0_i32_44 = arith.constant 0 : i32
        %66 = tpu.memref_slice %arg2[%65, %c0_i32_44] : memref<512x128xf32, #tpu.memory_space<any>> -> memref<1x128xf32, #tpu.memory_space<any>>
        %c0_i32_45 = arith.constant 0 : i32
        %67 = tpu.memref_slice %arg6[%c0_i32_42, %62, %c0_i32_45] : memref<2x256x128xf32, #tpu.memory_space<vmem>> -> memref<1x1x128xf32, #tpu.memory_space<vmem>>
        %68 = tpu.memref_squeeze %67 : memref<1x1x128xf32, #tpu.memory_space<vmem>> -> memref<1x128xf32, #tpu.memory_space<vmem>>
        %69 = tpu.memref_slice %arg7[%c0_i32_43] : memref<2x!tpu.dma_semaphore, #tpu.memory_space<semaphore_mem>> -> memref<1x!tpu.dma_semaphore, #tpu.memory_space<semaphore_mem>>
        %70 = tpu.memref_squeeze %69 : memref<1x!tpu.dma_semaphore, #tpu.memory_space<semaphore_mem>> -> memref<!tpu.dma_semaphore, #tpu.memory_space<semaphore_mem>>
        tpu.enqueue_dma source(%66 : memref<1x128xf32, #tpu.memory_space<any>>) target(%68 : memref<1x128xf32, #tpu.memory_space<vmem>>) target_semaphore(%70 : memref<!tpu.dma_semaphore, #tpu.memory_space<semaphore_mem>>)
        %c4_i32 = arith.constant 4 : i32
        %71 = arith.addi %34, %c4_i32 : i32
        %c0_i32_46 = arith.constant 0 : i32
        %72 = arith.addi %c0_i32_46, %71 : i32
        %73 = arith.index_cast %72 : i32 to index
        %74 = memref.load %arg1[%73] : memref<512xi32, #tpu.memory_space<smem>>
        %c0_i32_47 = arith.constant 0 : i32
        %c0_i32_48 = arith.constant 0 : i32
        %c0_i32_49 = arith.constant 0 : i32
        %75 = tpu.memref_slice %arg2[%74, %c0_i32_49] : memref<512x128xf32, #tpu.memory_space<any>> -> memref<1x128xf32, #tpu.memory_space<any>>
        %c0_i32_50 = arith.constant 0 : i32
        %76 = tpu.memref_slice %arg6[%c0_i32_47, %71, %c0_i32_50] : memref<2x256x128xf32, #tpu.memory_space<vmem>> -> memref<1x1x128xf32, #tpu.memory_space<vmem>>
        %77 = tpu.memref_squeeze %76 : memref<1x1x128xf32, #tpu.memory_space<vmem>> -> memref<1x128xf32, #tpu.memory_space<vmem>>
        %78 = tpu.memref_slice %arg7[%c0_i32_48] : memref<2x!tpu.dma_semaphore, #tpu.memory_space<semaphore_mem>> -> memref<1x!tpu.dma_semaphore, #tpu.memory_space<semaphore_mem>>
        %79 = tpu.memref_squeeze %78 : memref<1x!tpu.dma_semaphore, #tpu.memory_space<semaphore_mem>> -> memref<!tpu.dma_semaphore, #tpu.memory_space<semaphore_mem>>
        tpu.enqueue_dma source(%75 : memref<1x128xf32, #tpu.memory_space<any>>) target(%77 : memref<1x128xf32, #tpu.memory_space<vmem>>) target_semaphore(%79 : memref<!tpu.dma_semaphore, #tpu.memory_space<semaphore_mem>>)
        %c5_i32 = arith.constant 5 : i32
        %80 = arith.addi %34, %c5_i32 : i32
        %c0_i32_51 = arith.constant 0 : i32
        %81 = arith.addi %c0_i32_51, %80 : i32
        %82 = arith.index_cast %81 : i32 to index
        %83 = memref.load %arg1[%82] : memref<512xi32, #tpu.memory_space<smem>>
        %c0_i32_52 = arith.constant 0 : i32
        %c0_i32_53 = arith.constant 0 : i32
        %c0_i32_54 = arith.constant 0 : i32
        %84 = tpu.memref_slice %arg2[%83, %c0_i32_54] : memref<512x128xf32, #tpu.memory_space<any>> -> memref<1x128xf32, #tpu.memory_space<any>>
        %c0_i32_55 = arith.constant 0 : i32
        %85 = tpu.memref_slice %arg6[%c0_i32_52, %80, %c0_i32_55] : memref<2x256x128xf32, #tpu.memory_space<vmem>> -> memref<1x1x128xf32, #tpu.memory_space<vmem>>
        %86 = tpu.memref_squeeze %85 : memref<1x1x128xf32, #tpu.memory_space<vmem>> -> memref<1x128xf32, #tpu.memory_space<vmem>>
        %87 = tpu.memref_slice %arg7[%c0_i32_53] : memref<2x!tpu.dma_semaphore, #tpu.memory_space<semaphore_mem>> -> memref<1x!tpu.dma_semaphore, #tpu.memory_space<semaphore_mem>>
        %88 = tpu.memref_squeeze %87 : memref<1x!tpu.dma_semaphore, #tpu.memory_space<semaphore_mem>> -> memref<!tpu.dma_semaphore, #tpu.memory_space<semaphore_mem>>
        tpu.enqueue_dma source(%84 : memref<1x128xf32, #tpu.memory_space<any>>) target(%86 : memref<1x128xf32, #tpu.memory_space<vmem>>) target_semaphore(%88 : memref<!tpu.dma_semaphore, #tpu.memory_space<semaphore_mem>>)
        %c6_i32 = arith.constant 6 : i32
        %89 = arith.addi %34, %c6_i32 : i32
        %c0_i32_56 = arith.constant 0 : i32
        %90 = arith.addi %c0_i32_56, %89 : i32
        %91 = arith.index_cast %90 : i32 to index
        %92 = memref.load %arg1[%91] : memref<512xi32, #tpu.memory_space<smem>>
        %c0_i32_57 = arith.constant 0 : i32
        %c0_i32_58 = arith.constant 0 : i32
        %c0_i32_59 = arith.constant 0 : i32
        %93 = tpu.memref_slice %arg2[%92, %c0_i32_59] : memref<512x128xf32, #tpu.memory_space<any>> -> memref<1x128xf32, #tpu.memory_space<any>>
        %c0_i32_60 = arith.constant 0 : i32
        %94 = tpu.memref_slice %arg6[%c0_i32_57, %89, %c0_i32_60] : memref<2x256x128xf32, #tpu.memory_space<vmem>> -> memref<1x1x128xf32, #tpu.memory_space<vmem>>
        %95 = tpu.memref_squeeze %94 : memref<1x1x128xf32, #tpu.memory_space<vmem>> -> memref<1x128xf32, #tpu.memory_space<vmem>>
        %96 = tpu.memref_slice %arg7[%c0_i32_58] : memref<2x!tpu.dma_semaphore, #tpu.memory_space<semaphore_mem>> -> memref<1x!tpu.dma_semaphore, #tpu.memory_space<semaphore_mem>>
        %97 = tpu.memref_squeeze %96 : memref<1x!tpu.dma_semaphore, #tpu.memory_space<semaphore_mem>> -> memref<!tpu.dma_semaphore, #tpu.memory_space<semaphore_mem>>
        tpu.enqueue_dma source(%93 : memref<1x128xf32, #tpu.memory_space<any>>) target(%95 : memref<1x128xf32, #tpu.memory_space<vmem>>) target_semaphore(%97 : memref<!tpu.dma_semaphore, #tpu.memory_space<semaphore_mem>>)
        %c7_i32 = arith.constant 7 : i32
        %98 = arith.addi %34, %c7_i32 : i32
        %c0_i32_61 = arith.constant 0 : i32
        %99 = arith.addi %c0_i32_61, %98 : i32
        %100 = arith.index_cast %99 : i32 to index
        %101 = memref.load %arg1[%100] : memref<512xi32, #tpu.memory_space<smem>>
        %c0_i32_62 = arith.constant 0 : i32
        %c0_i32_63 = arith.constant 0 : i32
        %c0_i32_64 = arith.constant 0 : i32
        %102 = tpu.memref_slice %arg2[%101, %c0_i32_64] : memref<512x128xf32, #tpu.memory_space<any>> -> memref<1x128xf32, #tpu.memory_space<any>>
        %c0_i32_65 = arith.constant 0 : i32
        %103 = tpu.memref_slice %arg6[%c0_i32_62, %98, %c0_i32_65] : memref<2x256x128xf32, #tpu.memory_space<vmem>> -> memref<1x1x128xf32, #tpu.memory_space<vmem>>
        %104 = tpu.memref_squeeze %103 : memref<1x1x128xf32, #tpu.memory_space<vmem>> -> memref<1x128xf32, #tpu.memory_space<vmem>>
        %105 = tpu.memref_slice %arg7[%c0_i32_63] : memref<2x!tpu.dma_semaphore, #tpu.memory_space<semaphore_mem>> -> memref<1x!tpu.dma_semaphore, #tpu.memory_space<semaphore_mem>>
        %106 = tpu.memref_squeeze %105 : memref<1x!tpu.dma_semaphore, #tpu.memory_space<semaphore_mem>> -> memref<!tpu.dma_semaphore, #tpu.memory_space<semaphore_mem>>
        tpu.enqueue_dma source(%102 : memref<1x128xf32, #tpu.memory_space<any>>) target(%104 : memref<1x128xf32, #tpu.memory_space<vmem>>) target_semaphore(%106 : memref<!tpu.dma_semaphore, #tpu.memory_space<semaphore_mem>>)
      }
      %c32_i32_21 = arith.constant 32 : i32
    } else {
    }
    %c0_i32_5 = arith.constant 0 : i32
    %c0_i32_6 = arith.constant 0 : i32
    %13 = tpu.memref_slice %arg2[%c0_i32_5, %c0_i32_6] : memref<512x128xf32, #tpu.memory_space<any>> -> memref<256x128xf32, #tpu.memory_space<any>>
    %c0_i32_7 = arith.constant 0 : i32
    %c0_i32_8 = arith.constant 0 : i32
    %14 = tpu.memref_slice %arg6[%9, %c0_i32_7, %c0_i32_8] : memref<2x256x128xf32, #tpu.memory_space<vmem>> -> memref<1x256x128xf32, #tpu.memory_space<vmem>>
    %15 = tpu.memref_squeeze %14 : memref<1x256x128xf32, #tpu.memory_space<vmem>> -> memref<256x128xf32, #tpu.memory_space<vmem>>
    %16 = tpu.memref_slice %arg7[%9] : memref<2x!tpu.dma_semaphore, #tpu.memory_space<semaphore_mem>> -> memref<1x!tpu.dma_semaphore, #tpu.memory_space<semaphore_mem>>
    %17 = tpu.memref_squeeze %16 : memref<1x!tpu.dma_semaphore, #tpu.memory_space<semaphore_mem>> -> memref<!tpu.dma_semaphore, #tpu.memory_space<semaphore_mem>>
    tpu.wait_dma2 semaphore(%17 : memref<!tpu.dma_semaphore, #tpu.memory_space<semaphore_mem>>) src(%13 : memref<256x128xf32, #tpu.memory_space<any>>) dst(%15 : memref<256x128xf32, #tpu.memory_space<vmem>>)
    %c1_i32_9 = arith.constant 1 : i32
    %18 = arith.addi %arg0, %c1_i32_9 : i32
    %c2_i32_10 = arith.constant 2 : i32
    %19 = arith.cmpi slt, %18, %c2_i32_10 : i32
    %20 = arith.extui %19 : i1 to i32
    %c0_i32_11 = arith.constant 0 : i32
    %21 = arith.cmpi ne, %20, %c0_i32_11 : i32
    scf.if %21 {
      %c1_i32_19 = arith.constant 1 : i32
      %32 = arith.addi %arg0, %c1_i32_19 : i32
      %c1_i32_20 = arith.constant 1 : i32
      %33 = arith.subi %c1_i32_20, %9 : i32
      %c256_i32 = arith.constant 256 : i32
      %34 = arith.muli %32, %c256_i32 : i32
      %c0_i32_21 = arith.constant 0 : i32
      %c32_i32 = arith.constant 32 : i32
      %35 = arith.addi %c0_i32_21, %c32_i32 : i32
      %c1_i32_22 = arith.constant 1 : i32
      scf.for %arg8 = %c0_i32_21 to %35 step %c1_i32_22  : i32 {
        %c8_i32 = arith.constant 8 : i32
        %36 = arith.muli %arg8, %c8_i32 : i32
        %c0_i32_24 = arith.constant 0 : i32
        %37 = arith.addi %c0_i32_24, %36 : i32
        %c0_i32_25 = arith.constant 0 : i32
        %38 = arith.addi %37, %c0_i32_25 : i32
        %39 = arith.addi %34, %38 : i32
        %40 = arith.index_cast %39 : i32 to index
        %41 = memref.load %arg1[%40] : memref<512xi32, #tpu.memory_space<smem>>
        %c0_i32_26 = arith.constant 0 : i32
        %42 = tpu.memref_slice %arg2[%41, %c0_i32_26] : memref<512x128xf32, #tpu.memory_space<any>> -> memref<1x128xf32, #tpu.memory_space<any>>
        %c0_i32_27 = arith.constant 0 : i32
        %43 = tpu.memref_slice %arg6[%33, %38, %c0_i32_27] : memref<2x256x128xf32, #tpu.memory_space<vmem>> -> memref<1x1x128xf32, #tpu.memory_space<vmem>>
        %44 = tpu.memref_squeeze %43 : memref<1x1x128xf32, #tpu.memory_space<vmem>> -> memref<1x128xf32, #tpu.memory_space<vmem>>
        %45 = tpu.memref_slice %arg7[%33] : memref<2x!tpu.dma_semaphore, #tpu.memory_space<semaphore_mem>> -> memref<1x!tpu.dma_semaphore, #tpu.memory_space<semaphore_mem>>
        %46 = tpu.memref_squeeze %45 : memref<1x!tpu.dma_semaphore, #tpu.memory_space<semaphore_mem>> -> memref<!tpu.dma_semaphore, #tpu.memory_space<semaphore_mem>>
        tpu.enqueue_dma source(%42 : memref<1x128xf32, #tpu.memory_space<any>>) target(%44 : memref<1x128xf32, #tpu.memory_space<vmem>>) target_semaphore(%46 : memref<!tpu.dma_semaphore, #tpu.memory_space<semaphore_mem>>)
        %c1_i32_28 = arith.constant 1 : i32
        %47 = arith.addi %37, %c1_i32_28 : i32
        %48 = arith.addi %34, %47 : i32
        %49 = arith.index_cast %48 : i32 to index
        %50 = memref.load %arg1[%49] : memref<512xi32, #tpu.memory_space<smem>>
        %c0_i32_29 = arith.constant 0 : i32
        %51 = tpu.memref_slice %arg2[%50, %c0_i32_29] : memref<512x128xf32, #tpu.memory_space<any>> -> memref<1x128xf32, #tpu.memory_space<any>>
        %c0_i32_30 = arith.constant 0 : i32
        %52 = tpu.memref_slice %arg6[%33, %47, %c0_i32_30] : memref<2x256x128xf32, #tpu.memory_space<vmem>> -> memref<1x1x128xf32, #tpu.memory_space<vmem>>
        %53 = tpu.memref_squeeze %52 : memref<1x1x128xf32, #tpu.memory_space<vmem>> -> memref<1x128xf32, #tpu.memory_space<vmem>>
        %54 = tpu.memref_slice %arg7[%33] : memref<2x!tpu.dma_semaphore, #tpu.memory_space<semaphore_mem>> -> memref<1x!tpu.dma_semaphore, #tpu.memory_space<semaphore_mem>>
        %55 = tpu.memref_squeeze %54 : memref<1x!tpu.dma_semaphore, #tpu.memory_space<semaphore_mem>> -> memref<!tpu.dma_semaphore, #tpu.memory_space<semaphore_mem>>
        tpu.enqueue_dma source(%51 : memref<1x128xf32, #tpu.memory_space<any>>) target(%53 : memref<1x128xf32, #tpu.memory_space<vmem>>) target_semaphore(%55 : memref<!tpu.dma_semaphore, #tpu.memory_space<semaphore_mem>>)
        %c2_i32_31 = arith.constant 2 : i32
        %56 = arith.addi %37, %c2_i32_31 : i32
        %57 = arith.addi %34, %56 : i32
        %58 = arith.index_cast %57 : i32 to index
        %59 = memref.load %arg1[%58] : memref<512xi32, #tpu.memory_space<smem>>
        %c0_i32_32 = arith.constant 0 : i32
        %60 = tpu.memref_slice %arg2[%59, %c0_i32_32] : memref<512x128xf32, #tpu.memory_space<any>> -> memref<1x128xf32, #tpu.memory_space<any>>
        %c0_i32_33 = arith.constant 0 : i32
        %61 = tpu.memref_slice %arg6[%33, %56, %c0_i32_33] : memref<2x256x128xf32, #tpu.memory_space<vmem>> -> memref<1x1x128xf32, #tpu.memory_space<vmem>>
        %62 = tpu.memref_squeeze %61 : memref<1x1x128xf32, #tpu.memory_space<vmem>> -> memref<1x128xf32, #tpu.memory_space<vmem>>
        %63 = tpu.memref_slice %arg7[%33] : memref<2x!tpu.dma_semaphore, #tpu.memory_space<semaphore_mem>> -> memref<1x!tpu.dma_semaphore, #tpu.memory_space<semaphore_mem>>
        %64 = tpu.memref_squeeze %63 : memref<1x!tpu.dma_semaphore, #tpu.memory_space<semaphore_mem>> -> memref<!tpu.dma_semaphore, #tpu.memory_space<semaphore_mem>>
        tpu.enqueue_dma source(%60 : memref<1x128xf32, #tpu.memory_space<any>>) target(%62 : memref<1x128xf32, #tpu.memory_space<vmem>>) target_semaphore(%64 : memref<!tpu.dma_semaphore, #tpu.memory_space<semaphore_mem>>)
        %c3_i32 = arith.constant 3 : i32
        %65 = arith.addi %37, %c3_i32 : i32
        %66 = arith.addi %34, %65 : i32
        %67 = arith.index_cast %66 : i32 to index
        %68 = memref.load %arg1[%67] : memref<512xi32, #tpu.memory_space<smem>>
        %c0_i32_34 = arith.constant 0 : i32
        %69 = tpu.memref_slice %arg2[%68, %c0_i32_34] : memref<512x128xf32, #tpu.memory_space<any>> -> memref<1x128xf32, #tpu.memory_space<any>>
        %c0_i32_35 = arith.constant 0 : i32
        %70 = tpu.memref_slice %arg6[%33, %65, %c0_i32_35] : memref<2x256x128xf32, #tpu.memory_space<vmem>> -> memref<1x1x128xf32, #tpu.memory_space<vmem>>
        %71 = tpu.memref_squeeze %70 : memref<1x1x128xf32, #tpu.memory_space<vmem>> -> memref<1x128xf32, #tpu.memory_space<vmem>>
        %72 = tpu.memref_slice %arg7[%33] : memref<2x!tpu.dma_semaphore, #tpu.memory_space<semaphore_mem>> -> memref<1x!tpu.dma_semaphore, #tpu.memory_space<semaphore_mem>>
        %73 = tpu.memref_squeeze %72 : memref<1x!tpu.dma_semaphore, #tpu.memory_space<semaphore_mem>> -> memref<!tpu.dma_semaphore, #tpu.memory_space<semaphore_mem>>
        tpu.enqueue_dma source(%69 : memref<1x128xf32, #tpu.memory_space<any>>) target(%71 : memref<1x128xf32, #tpu.memory_space<vmem>>) target_semaphore(%73 : memref<!tpu.dma_semaphore, #tpu.memory_space<semaphore_mem>>)
        %c4_i32 = arith.constant 4 : i32
        %74 = arith.addi %37, %c4_i32 : i32
        %75 = arith.addi %34, %74 : i32
        %76 = arith.index_cast %75 : i32 to index
        %77 = memref.load %arg1[%76] : memref<512xi32, #tpu.memory_space<smem>>
        %c0_i32_36 = arith.constant 0 : i32
        %78 = tpu.memref_slice %arg2[%77, %c0_i32_36] : memref<512x128xf32, #tpu.memory_space<any>> -> memref<1x128xf32, #tpu.memory_space<any>>
        %c0_i32_37 = arith.constant 0 : i32
        %79 = tpu.memref_slice %arg6[%33, %74, %c0_i32_37] : memref<2x256x128xf32, #tpu.memory_space<vmem>> -> memref<1x1x128xf32, #tpu.memory_space<vmem>>
        %80 = tpu.memref_squeeze %79 : memref<1x1x128xf32, #tpu.memory_space<vmem>> -> memref<1x128xf32, #tpu.memory_space<vmem>>
        %81 = tpu.memref_slice %arg7[%33] : memref<2x!tpu.dma_semaphore, #tpu.memory_space<semaphore_mem>> -> memref<1x!tpu.dma_semaphore, #tpu.memory_space<semaphore_mem>>
        %82 = tpu.memref_squeeze %81 : memref<1x!tpu.dma_semaphore, #tpu.memory_space<semaphore_mem>> -> memref<!tpu.dma_semaphore, #tpu.memory_space<semaphore_mem>>
        tpu.enqueue_dma source(%78 : memref<1x128xf32, #tpu.memory_space<any>>) target(%80 : memref<1x128xf32, #tpu.memory_space<vmem>>) target_semaphore(%82 : memref<!tpu.dma_semaphore, #tpu.memory_space<semaphore_mem>>)
        %c5_i32 = arith.constant 5 : i32
        %83 = arith.addi %37, %c5_i32 : i32
        %84 = arith.addi %34, %83 : i32
        %85 = arith.index_cast %84 : i32 to index
        %86 = memref.load %arg1[%85] : memref<512xi32, #tpu.memory_space<smem>>
        %c0_i32_38 = arith.constant 0 : i32
        %87 = tpu.memref_slice %arg2[%86, %c0_i32_38] : memref<512x128xf32, #tpu.memory_space<any>> -> memref<1x128xf32, #tpu.memory_space<any>>
        %c0_i32_39 = arith.constant 0 : i32
        %88 = tpu.memref_slice %arg6[%33, %83, %c0_i32_39] : memref<2x256x128xf32, #tpu.memory_space<vmem>> -> memref<1x1x128xf32, #tpu.memory_space<vmem>>
        %89 = tpu.memref_squeeze %88 : memref<1x1x128xf32, #tpu.memory_space<vmem>> -> memref<1x128xf32, #tpu.memory_space<vmem>>
        %90 = tpu.memref_slice %arg7[%33] : memref<2x!tpu.dma_semaphore, #tpu.memory_space<semaphore_mem>> -> memref<1x!tpu.dma_semaphore, #tpu.memory_space<semaphore_mem>>
        %91 = tpu.memref_squeeze %90 : memref<1x!tpu.dma_semaphore, #tpu.memory_space<semaphore_mem>> -> memref<!tpu.dma_semaphore, #tpu.memory_space<semaphore_mem>>
        tpu.enqueue_dma source(%87 : memref<1x128xf32, #tpu.memory_space<any>>) target(%89 : memref<1x128xf32, #tpu.memory_space<vmem>>) target_semaphore(%91 : memref<!tpu.dma_semaphore, #tpu.memory_space<semaphore_mem>>)
        %c6_i32 = arith.constant 6 : i32
        %92 = arith.addi %37, %c6_i32 : i32
        %93 = arith.addi %34, %92 : i32
        %94 = arith.index_cast %93 : i32 to index
        %95 = memref.load %arg1[%94] : memref<512xi32, #tpu.memory_space<smem>>
        %c0_i32_40 = arith.constant 0 : i32
        %96 = tpu.memref_slice %arg2[%95, %c0_i32_40] : memref<512x128xf32, #tpu.memory_space<any>> -> memref<1x128xf32, #tpu.memory_space<any>>
        %c0_i32_41 = arith.constant 0 : i32
        %97 = tpu.memref_slice %arg6[%33, %92, %c0_i32_41] : memref<2x256x128xf32, #tpu.memory_space<vmem>> -> memref<1x1x128xf32, #tpu.memory_space<vmem>>
        %98 = tpu.memref_squeeze %97 : memref<1x1x128xf32, #tpu.memory_space<vmem>> -> memref<1x128xf32, #tpu.memory_space<vmem>>
        %99 = tpu.memref_slice %arg7[%33] : memref<2x!tpu.dma_semaphore, #tpu.memory_space<semaphore_mem>> -> memref<1x!tpu.dma_semaphore, #tpu.memory_space<semaphore_mem>>
        %100 = tpu.memref_squeeze %99 : memref<1x!tpu.dma_semaphore, #tpu.memory_space<semaphore_mem>> -> memref<!tpu.dma_semaphore, #tpu.memory_space<semaphore_mem>>
        tpu.enqueue_dma source(%96 : memref<1x128xf32, #tpu.memory_space<any>>) target(%98 : memref<1x128xf32, #tpu.memory_space<vmem>>) target_semaphore(%100 : memref<!tpu.dma_semaphore, #tpu.memory_space<semaphore_mem>>)
        %c7_i32 = arith.constant 7 : i32
        %101 = arith.addi %37, %c7_i32 : i32
        %102 = arith.addi %34, %101 : i32
        %103 = arith.index_cast %102 : i32 to index
        %104 = memref.load %arg1[%103] : memref<512xi32, #tpu.memory_space<smem>>
        %c0_i32_42 = arith.constant 0 : i32
        %105 = tpu.memref_slice %arg2[%104, %c0_i32_42] : memref<512x128xf32, #tpu.memory_space<any>> -> memref<1x128xf32, #tpu.memory_space<any>>
        %c0_i32_43 = arith.constant 0 : i32
        %106 = tpu.memref_slice %arg6[%33, %101, %c0_i32_43] : memref<2x256x128xf32, #tpu.memory_space<vmem>> -> memref<1x1x128xf32, #tpu.memory_space<vmem>>
        %107 = tpu.memref_squeeze %106 : memref<1x1x128xf32, #tpu.memory_space<vmem>> -> memref<1x128xf32, #tpu.memory_space<vmem>>
        %108 = tpu.memref_slice %arg7[%33] : memref<2x!tpu.dma_semaphore, #tpu.memory_space<semaphore_mem>> -> memref<1x!tpu.dma_semaphore, #tpu.memory_space<semaphore_mem>>
        %109 = tpu.memref_squeeze %108 : memref<1x!tpu.dma_semaphore, #tpu.memory_space<semaphore_mem>> -> memref<!tpu.dma_semaphore, #tpu.memory_space<semaphore_mem>>
        tpu.enqueue_dma source(%105 : memref<1x128xf32, #tpu.memory_space<any>>) target(%107 : memref<1x128xf32, #tpu.memory_space<vmem>>) target_semaphore(%109 : memref<!tpu.dma_semaphore, #tpu.memory_space<semaphore_mem>>)
      }
      %c32_i32_23 = arith.constant 32 : i32
    } else {
    }
    %22 = arith.index_cast %9 : i32 to index
    %c0 = arith.constant 0 : index
    %c0_12 = arith.constant 0 : index
    %23 = vector.load %arg6[%22, %c0, %c0_12] : memref<2x256x128xf32, #tpu.memory_space<vmem>>, vector<1x256x128xf32>
    %24 = vector.shape_cast %23 : vector<1x256x128xf32> to vector<256x128xf32>
    %25 = arith.truncf %24 : vector<256x128xf32> to vector<256x128xbf16>
    %c0_13 = arith.constant 0 : index
    %c0_14 = arith.constant 0 : index
    %26 = vector.load %arg3[%c0_13, %c0_14] : memref<128x128xbf16, #tpu.memory_space<vmem>>, vector<128x128xbf16>
    %cst = arith.constant dense<0.000000e+00> : vector<256x128xf32>
    %27 = tpu.matmul %25, %26, %cst {dimension_numbers = #tpu.dot_dimension_numbers<[1], [0], [0], [1], [0, 0, 1, 1], [], []>} : vector<256x128xbf16>, vector<128x128xbf16>, vector<256x128xf32> -> vector<256x128xf32>
    %c0_15 = arith.constant 0 : index
    %c0_16 = arith.constant 0 : index
    %28 = vector.load %arg4[%c0_15, %c0_16] : memref<1x128xf32, #tpu.memory_space<vmem>>, vector<1x128xf32>
    %29 = vector.broadcast %28 : vector<1x128xf32> to vector<256x128xf32>
    %30 = arith.addf %27, %29 : vector<256x128xf32>
    %c0_17 = arith.constant 0 : index
    %c0_18 = arith.constant 0 : index
    %31 = vector.load %arg5[%c0_17, %c0_18] : memref<256x128xf32, #tpu.memory_space<vmem>>, vector<256x128xf32>
    tpu.vector_store %arg5[%c0_17, %c0_18], %30 {strides = array<i32>} : memref<256x128xf32, #tpu.memory_space<vmem>>, vector<256x128xf32>,
    return
  }
  func.func @transform_1(%arg0: i32, %arg1: memref<512xi32, #tpu.memory_space<smem>>) -> (i32, i32) {
    %c0_i32 = arith.constant 0 : i32
    %c0_i32_0 = arith.constant 0 : i32
    %c0_i32_1 = arith.constant 0 : i32
    return %c0_i32, %c0_i32_0 : i32, i32
  }
  func.func @transform_2(%arg0: i32, %arg1: memref<512xi32, #tpu.memory_space<smem>>) -> (i32, i32) {
    %c0_i32 = arith.constant 0 : i32
    %c0_i32_0 = arith.constant 0 : i32
    %c0_i32_1 = arith.constant 0 : i32
    return %c0_i32, %c0_i32_0 : i32, i32
  }
  func.func @transform_3(%arg0: i32, %arg1: memref<512xi32, #tpu.memory_space<smem>>) -> (i32, i32) {
    %c0_i32 = arith.constant 0 : i32
    %c0_i32_0 = arith.constant 0 : i32
    return %arg0, %c0_i32 : i32, i32
  }
}

</mosaic_0001>

<llo_original>
// kernel: sgc_forward.1
$region0: #{sgc_forward.1}
  #allocation0 [shape = 'u32[]', space=smem, size = 0x4, offset = 0x4, fixed_abs, tag = 'smem constant byte address 0x4 - core index']
  #allocation1 [shape = 'u32[144,128]{1,0:T(1,128)}', space=vmem, size = 0x12000, scoped, tag = 'internal scratch']
  #allocation2 [shape = 'f32[2,256,128]{2,1,0:T(8,128)}', space=vmem, size = 0x40000, scoped, tag = 'scratch operand']
  #allocation3 [shape = 's32[2]{0}', space=sflag, size = 0x8, scoped, tag = 'scratch operand']
  #allocation4 [shape = 's32[1]{0}', space=sflag, size = 0x4, scoped, tag = 'scoped memory for sgc_forward.1']
  #allocation5 [shape = 'u8[2048]{0}', space=smem, size = 0x800, scoped, tag = 'prefetched SMEM operand 0']
  #allocation6 [shape = 's32[]', space=sflag, size = 0x4, offset = 0, fixed_abs, tag = 'sflag constant byte address 0x0 - dummy sync flag']
  #allocation7 [shape = 's32[]', space=sflag, size = 0x4, offset = 0, fixed_abs, tag = 'sflag constant byte address 0x0 - dummy sync flag']
  #allocation8 [shape = 'u32[]', space=smem, size = 0x4, offset = 0x44, fixed_abs, tag = 'smem constant byte address 0x44 - assertion arg 0']
  #allocation9 [shape = 'u32[]', space=smem, size = 0x4, offset = 0x48, fixed_abs, tag = 'smem constant byte address 0x48 - assertion arg 1']
  #allocation10 [shape = 's32[]', space=sflag, size = 0x4, offset = 0, fixed_abs, tag = 'sflag constant byte address 0x0 - dummy sync flag']
  #allocation11 [shape = 's32[]', space=sflag, size = 0x4, offset = 0, fixed_abs, tag = 'sflag constant byte address 0x0 - dummy sync flag']
  #allocation12 [shape = 's32[]', space=sflag, size = 0x4, offset = 0, fixed_abs, tag = 'sflag constant byte address 0x0 - dummy sync flag']
  #allocation13 [shape = 's32[]', space=sflag, size = 0x4, offset = 0, fixed_abs, tag = 'sflag constant byte address 0x0 - dummy sync flag']
  #allocation14 [shape = 's32[]', space=sflag, size = 0x4, offset = 0, fixed_abs, tag = 'sflag constant byte address 0x0 - dummy sync flag']
  #allocation15 [shape = 's32[]', space=sflag, size = 0x4, offset = 0, fixed_abs, tag = 'sflag constant byte address 0x0 - dummy sync flag']
  #allocation16 [shape = 's32[]', space=sflag, size = 0x4, offset = 0, fixed_abs, tag = 'sflag constant byte address 0x0 - dummy sync flag']
  #allocation17 [shape = 's32[]', space=sflag, size = 0x4, offset = 0, fixed_abs, tag = 'sflag constant byte address 0x0 - dummy sync flag']
  #allocation18 [shape = 's32[]', space=sflag, size = 0x4, offset = 0, fixed_abs, tag = 'sflag constant byte address 0x0 - dummy sync flag']
  #allocation19 [shape = 's32[]', space=sflag, size = 0x4, offset = 0, fixed_abs, tag = 'sflag constant byte address 0x0 - dummy sync flag']
  #allocation20 [shape = 's32[]', space=sflag, size = 0x4, offset = 0, fixed_abs, tag = 'sflag constant byte address 0x0 - dummy sync flag']
  #allocation21 [shape = 's32[]', space=sflag, size = 0x4, offset = 0, fixed_abs, tag = 'sflag constant byte address 0x0 - dummy sync flag']
  #allocation22 [shape = 's32[]', space=sflag, size = 0x4, offset = 0, fixed_abs, tag = 'sflag constant byte address 0x0 - dummy sync flag']
  #allocation23 [shape = 's32[]', space=sflag, size = 0x4, offset = 0, fixed_abs, tag = 'sflag constant byte address 0x0 - dummy sync flag']
  #allocation24 [shape = 's32[]', space=sflag, size = 0x4, offset = 0, fixed_abs, tag = 'sflag constant byte address 0x0 - dummy sync flag']
  #allocation25 [shape = 's32[]', space=sflag, size = 0x4, offset = 0, fixed_abs, tag = 'sflag constant byte address 0x0 - dummy sync flag']
  #allocation26 [shape = 's32[]', space=sflag, size = 0x4, offset = 0, fixed_abs, tag = 'sflag constant byte address 0x0 - dummy sync flag']
  #allocation27 [shape = 's32[]', space=sflag, size = 0x4, offset = 0, fixed_abs, tag = 'sflag constant byte address 0x0 - dummy sync flag']
  #allocation28 [shape = 's32[]', space=sflag, size = 0x4, offset = 0, fixed_abs, tag = 'sflag constant byte address 0x0 - dummy sync flag']
  #allocation29 [shape = 's32[]', space=sflag, size = 0x4, offset = 0, fixed_abs, tag = 'sflag constant byte address 0x0 - dummy sync flag']
  #allocation30 [shape = 's32[]', space=sflag, size = 0x4, offset = 0, fixed_abs, tag = 'sflag constant byte address 0x0 - dummy sync flag']
  #allocation31 [shape = 's32[]', space=sflag, size = 0x4, offset = 0, fixed_abs, tag = 'sflag constant byte address 0x0 - dummy sync flag']
  #allocation32 [shape = 's32[]', space=sflag, size = 0x4, offset = 0, fixed_abs, tag = 'sflag constant byte address 0x0 - dummy sync flag']
  #allocation33 [shape = 's32[]', space=sflag, size = 0x4, offset = 0, fixed_abs, tag = 'sflag constant byte address 0x0 - dummy sync flag']
  #allocation34 [shape = 's32[]', space=sflag, size = 0x4, offset = 0, fixed_abs, tag = 'sflag constant byte address 0x0 - dummy sync flag']
  #allocation35 [shape = 's32[]', space=sflag, size = 0x4, offset = 0, fixed_abs, tag = 'sflag constant byte address 0x0 - dummy sync flag']
  #allocation36 [shape = 's32[]', space=sflag, size = 0x4, offset = 0, fixed_abs, tag = 'sflag constant byte address 0x0 - dummy sync flag']
  #allocation37 [shape = 's32[]', space=sflag, size = 0x4, offset = 0, fixed_abs, tag = 'sflag constant byte address 0x0 - dummy sync flag']
  #allocation38 [shape = 's32[]', space=sflag, size = 0x4, offset = 0, fixed_abs, tag = 'sflag constant byte address 0x0 - dummy sync flag']
  #allocation39 [shape = 's32[]', space=sflag, size = 0x4, offset = 0, fixed_abs, tag = 'sflag constant byte address 0x0 - dummy sync flag']
  %s0 = inlined_call_operand.vmem [shape: s32[512], index: 0, kind: input, shape index: {}]
  %s1 = inlined_call_operand.hbm [shape: f32[512,128], index: 1, kind: input, shape index: {}]
  %s2 = inlined_call_operand.vmem [shape: bf16[128,128], index: 2, kind: input, shape index: {}]
  %s3 = inlined_call_operand.vmem [shape: f32[1,128], index: 3, kind: input, shape index: {}]
  %s4 = inlined_call_operand.vmem [shape: f32[512,128], index: 4, kind: output, shape index: {}]
  %s5 = sld [smem:[#allocation0]]
  $region127: #{sgc_forward.1} parent=0
    _
  %s7 = ssub.s32 1, %s5
  %s8 = scalar_select 0, %s7, %s5
  %s9 = sshll.u32 %s0, 4
  %s10 = int_to_ptr.vmem [resolvable:$true] %s9
  %12 = dma.vmem_to_smem %s10, 64, [#allocation5], [#allocation4]
  %13 = dma.done [#allocation4], 64
  %14 = sfence
  loop: start=0, step=1, limit=4
  $region2: #{sgc_forward.1} parent=0 // loop_pre_header
    _
  $region3: #{sgc_forward.1} parent=0 // loop_header
    %s16 = sphi 0, %s20
    %p17 = scmp.ge.s32.totalorder %s16, 4
    %s24 = sphi 0, %s24
    %s26 = sphi 0, %s24
    %s27 = sphi 0, %s26
    %s41 = sphi 0, %s27
    %s45 = sphi 0, %s45
    %s47 = sphi 0, %s45
    %s48 = sphi 0, %s47
    %s62 = sphi 0, %s48
    %s68 = sphi 0, %s70
    %s71 = sphi 0, %s68
    %s72 = sphi 0, %s71
    %s88 = sphi 0, %s72
  $region4: #{sgc_forward.1} parent=0 // loop_header_branch
    %19 = sbr.rel (%p17) target = $region8
  $region5: #{sgc_forward.1} parent=0 // loop_body
    %s21 = ssub.s32 %s16, 1
    %s22 = ssub.s32 %s16, 2
    %s23 = sadd.s32 %s16, 1
    %s25 = sadd.s32 %s24, 1
    %p28 = scmp.eq.s32.totalorder %s16, 1
    %p29 = scmp.ne.s32.totalorder %s24, %s26
    %p30 = scmp.eq.s32.totalorder %s16, 0
    %p31 = por %p29, %p30
    %p32 = scmp.ne.s32.totalorder %s24, %s26
    %p33 = scmp.eq.s32.totalorder %s21, 1
    %p34 = por %p32, %p33
    %p35 = scmp.ne.s32.totalorder %s26, %s27
    %p36 = scmp.eq.s32.totalorder %s21, 0
    %p37 = por %p35, %p36
    %p38 = scmp.ne.s32.totalorder %s26, %s27
    %p39 = scmp.eq.s32.totalorder %s22, 1
    %p40 = por %p38, %p39
    %p42 = scmp.ne.s32.totalorder %s27, %s41
    %p43 = scmp.eq.s32.totalorder %s22, 0
    %p44 = por %p42, %p43
    %s46 = sadd.s32 %s45, 1
    %p49 = scmp.eq.s32.totalorder %s16, 1
    %p50 = scmp.ne.s32.totalorder %s45, %s47
    %p51 = scmp.eq.s32.totalorder %s16, 0
    %p52 = por %p50, %p51
    %p53 = scmp.ne.s32.totalorder %s45, %s47
    %p54 = scmp.eq.s32.totalorder %s21, 1
    %p55 = por %p53, %p54
    %p56 = scmp.ne.s32.totalorder %s47, %s48
    %p57 = scmp.eq.s32.totalorder %s21, 0
    %p58 = por %p56, %p57
    %p59 = scmp.ne.s32.totalorder %s47, %s48
    %p60 = scmp.eq.s32.totalorder %s22, 1
    %p61 = por %p59, %p60
    %p63 = scmp.ne.s32.totalorder %s48, %s62
    %p64 = scmp.eq.s32.totalorder %s22, 0
    %p65 = por %p63, %p64
    %s66 = ssub.s32 %s16, %s23
    %p67 = scmp.eq.s32.totalorder %s66, 0
    %s69 = sadd.s32 %s68, 1
    %s70 = scalar_select %p67, %s68, %s69
    %p73 = pneg %p67
    %p74 = scmp.eq.s32.totalorder %s16, 1
    %p75 = por %p73, %p74
    %p76 = scmp.ne.s32.totalorder %s68, %s71
    %p77 = scmp.eq.s32.totalorder %s16, 0
    %p78 = por %p76, %p77
    %p79 = scmp.ne.s32.totalorder %s68, %s71
    %p80 = scmp.eq.s32.totalorder %s21, 1
    %p81 = por %p79, %p80
    %p82 = scmp.ne.s32.totalorder %s71, %s72
    %p83 = scmp.eq.s32.totalorder %s21, 0
    %p84 = por %p82, %p83
    %p85 = scmp.ne.s32.totalorder %s71, %s72
    %p86 = scmp.eq.s32.totalorder %s22, 1
    %p87 = por %p85, %p86
    %p89 = scmp.ne.s32.totalorder %s72, %s88
    %p90 = scmp.eq.s32.totalorder %s22, 0
    %p91 = por %p89, %p90
    %p92 = scmp.le.s32.totalorder 1, %s16
    %p93 = scmp.lt.s32.totalorder %s16, 3
    %p94 = pnand %p92, %p93
    %p95 = pneg %p94
    // Predicated region
    $region9: #{sgc_forward.1} parent=5 // pred_check
      _
    $region10: #{sgc_forward.1} parent=5 // pred_check_branch
      %97 = sbr.rel (%p94) target = $region12
    $region11: #{sgc_forward.1} parent=5 // pred_region
      %s98 = ssub.s32 %s16, 1
      // Predicated region
      $region13: #{sgc_forward.1} parent=11 // pred_check
        %p99 = pneg %p37
      $region14: #{sgc_forward.1} parent=11 // pred_check_branch
        %101 = sbr.rel (%p99) target = $region16
      $region15: #{sgc_forward.1} parent=11 // pred_region
        _
      $region16: #{sgc_forward.1} parent=11 // pred_fallthru
        _
      // Predicated region
      $region17: #{sgc_forward.1} parent=11 // pred_check
        %p102 = pneg %p58
      $region18: #{sgc_forward.1} parent=11 // pred_check_branch
        %104 = sbr.rel (%p102) target = $region20
      $region19: #{sgc_forward.1} parent=11 // pred_region
        _
      $region20: #{sgc_forward.1} parent=11 // pred_fallthru
        _
    $region12: #{sgc_forward.1} parent=5 // pred_fallthru
      _
    %p105 = scmp.lt.s32.totalorder %s16, 2
    // Predicated region
    $region21: #{sgc_forward.1} parent=5 // pred_check
      %p106 = pneg %p105
    $region22: #{sgc_forward.1} parent=5 // pred_check_branch
      %108 = sbr.rel (%p106) target = $region24
    $region23: #{sgc_forward.1} parent=5 // pred_region
      _
    $region24: #{sgc_forward.1} parent=5 // pred_fallthru
      _
    %p109 = scmp.le.s32.totalorder 1, %s16
    %p110 = scmp.lt.s32.totalorder %s16, 3
    %p111 = pnand %p109, %p110
    %p112 = pneg %p111
    // Predicated region
    $region25: #{sgc_forward.1} parent=5 // pred_check
      _
    $region26: #{sgc_forward.1} parent=5 // pred_check_branch
      %114 = sbr.rel (%p111) target = $region28
    $region27: #{sgc_forward.1} parent=5 // pred_region
      %s115 = ssub.s32 %s16, 1
      %p116 = pneg %p37
      %p117 = pneg %p34
      %p118 = pneg %p58
      %p119 = pneg %p55
      %p120 = pneg %p84
      %p121 = pneg %p81
      %s122 = smul.u32 32, %s21
      %p123 = scmp.lt.s32.totalorder %s122, 63
      %s124 = scalar_select %p123, %s122, 63
      %s125 = smul.addr %s124, 8
      %s126 = scalar_lea.vmem %s4, %s125
      %s127 = smul.u32 32, %s21
      %p128 = scmp.lt.s32.totalorder %s127, 63
      %s129 = scalar_select %p128, %s127, 63
      %s130 = smul.addr %s129, 8
      %s131 = scalar_lea.vmem %s4, %s130
      %s132 = smul.u32 32, %s21
      %p134 = scmp.lt.s32.totalorder %s21, 0
      %s135 = ssub.s32 0, %s21
      %s136 = scalar_select %p134, %s135, %s21
      %s137 = sand.u32 %s136, 1
      %s138 = ssub.s32 0, %s137
      %s139 = scalar_select %p134, %s138, %s137
      %p140 = scmp.ne.s32.totalorder %s139, 0
      %p141 = scmp.lt.s32.totalorder %s139, 0
      %p142 = pnand %p141, %p140
      %p143 = pneg %p142
      %s144 = sadd.s32 %s139, 2
      %s145 = scalar_select %p143, %s144, %s139
      %p146 = scmp.eq.s32.totalorder %s21, 0
      // Predicated region
      $region29: #{sgc_forward.1} parent=27 // pred_check
        %p147 = pneg %p146
      $region30: #{sgc_forward.1} parent=27 // pred_check_branch
        %149 = sbr.rel (%p147) target = $region32
      $region31: #{sgc_forward.1} parent=27 // pred_region
        loop: start=0, step=1, limit=32
        $region33: #{sgc_forward.1} parent=31 // loop_pre_header
          _
        $region34: #{sgc_forward.1} parent=31 // loop_header
          %s151 = sphi 0, %s155
          %p152 = scmp.ge.s32.totalorder %s151, 32
        $region35: #{sgc_forward.1} parent=31 // loop_header_branch
          %154 = sbr.rel (%p152) target = $region39
        $region36: #{sgc_forward.1} parent=31 // loop_body
          %s156 = smul.u32 %s151, 8
          %s157 = sld [smem:[#allocation5 + %s156]]
          %s158 = smul.addr %s157, 16
          %s159 = scalar_lea.hbm %s1, %s158
          %s160 = scalar_lea.vmem [#allocation2], %s156
          // Predicated region
          $region40: #{sgc_forward.1} parent=36 // pred_check
            _
          $region41: #{sgc_forward.1} parent=36 // pred_check_branch
            %162 = sbr.rel target = $region43
          $region42: #{sgc_forward.1} parent=36 // pred_region
            %163 = sst [smem:[#allocation8]] [#allocation7]
            %164 = sst [smem:[#allocation9]] [#allocation6]
          $region43: #{sgc_forward.1} parent=36 // pred_fallthru
            _
          %166 = shalt.err (0)
          %s168 = sshll.u32 %s160, 4
          %s169 = int_to_ptr.vmem [resolvable:$true] %s168
          %171 = dma.hbm_to_vmem [thread:$0]  %s159, 16, %s169, [#allocation3]
          %s172 = sadd.s32 %s156, 1
          %s173 = sld [smem:[#allocation5 + %s172]]
          %s174 = smul.addr %s173, 16
          %s175 = scalar_lea.hbm %s1, %s174
          %s176 = scalar_lea.vmem [#allocation2], %s172
          // Predicated region
          $region44: #{sgc_forward.1} parent=36 // pred_check
            _
          $region45: #{sgc_forward.1} parent=36 // pred_check_branch
            %178 = sbr.rel target = $region47
          $region46: #{sgc_forward.1} parent=36 // pred_region
            %179 = sst [smem:[#allocation8]] [#allocation11]
            %180 = sst [smem:[#allocation9]] [#allocation10]
          $region47: #{sgc_forward.1} parent=36 // pred_fallthru
            _
          %182 = shalt.err (0)
          %s184 = sshll.u32 %s176, 4
          %s185 = int_to_ptr.vmem [resolvable:$true] %s184
          %187 = dma.hbm_to_vmem [thread:$0]  %s175, 16, %s185, [#allocation3]
          %s188 = sadd.s32 %s156, 2
          %s189 = sld [smem:[#allocation5 + %s188]]
          %s190 = smul.addr %s189, 16
          %s191 = scalar_lea.hbm %s1, %s190
          %s192 = scalar_lea.vmem [#allocation2], %s188
          // Predicated region
          $region48: #{sgc_forward.1} parent=36 // pred_check
            _
          $region49: #{sgc_forward.1} parent=36 // pred_check_branch
            %194 = sbr.rel target = $region51
          $region50: #{sgc_forward.1} parent=36 // pred_region
            %195 = sst [smem:[#allocation8]] [#allocation13]
            %196 = sst [smem:[#allocation9]] [#allocation12]
          $region51: #{sgc_forward.1} parent=36 // pred_fallthru
            _
          %198 = shalt.err (0)
          %s200 = sshll.u32 %s192, 4
          %s201 = int_to_ptr.vmem [resolvable:$true] %s200
          %203 = dma.hbm_to_vmem [thread:$0]  %s191, 16, %s201, [#allocation3]
          %s204 = sadd.s32 %s156, 3
          %s205 = sld [smem:[#allocation5 + %s204]]
          %s206 = smul.addr %s205, 16
          %s207 = scalar_lea.hbm %s1, %s206
          %s208 = scalar_lea.vmem [#allocation2], %s204
          // Predicated region
          $region52: #{sgc_forward.1} parent=36 // pred_check
            _
          $region53: #{sgc_forward.1} parent=36 // pred_check_branch
            %210 = sbr.rel target = $region55
          $region54: #{sgc_forward.1} parent=36 // pred_region
            %211 = sst [smem:[#allocation8]] [#allocation15]
            %212 = sst [smem:[#allocation9]] [#allocation14]
          $region55: #{sgc_forward.1} parent=36 // pred_fallthru
            _
          %214 = shalt.err (0)
          %s216 = sshll.u32 %s208, 4
          %s217 = int_to_ptr.vmem [resolvable:$true] %s216
          %219 = dma.hbm_to_vmem [thread:$0]  %s207, 16, %s217, [#allocation3]
          %s220 = sadd.s32 %s156, 4
          %s221 = sld [smem:[#allocation5 + %s220]]
          %s222 = smul.addr %s221, 16
          %s223 = scalar_lea.hbm %s1, %s222
          %s224 = scalar_lea.vmem [#allocation2], %s220
          // Predicated region
          $region56: #{sgc_forward.1} parent=36 // pred_check
            _
          $region57: #{sgc_forward.1} parent=36 // pred_check_branch
            %226 = sbr.rel target = $region59
          $region58: #{sgc_forward.1} parent=36 // pred_region
            %227 = sst [smem:[#allocation8]] [#allocation17]
            %228 = sst [smem:[#allocation9]] [#allocation16]
          $region59: #{sgc_forward.1} parent=36 // pred_fallthru
            _
          %230 = shalt.err (0)
          %s232 = sshll.u32 %s224, 4
          %s233 = int_to_ptr.vmem [resolvable:$true] %s232
          %235 = dma.hbm_to_vmem [thread:$0]  %s223, 16, %s233, [#allocation3]
          %s236 = sadd.s32 %s156, 5
          %s237 = sld [smem:[#allocation5 + %s236]]
          %s238 = smul.addr %s237, 16
          %s239 = scalar_lea.hbm %s1, %s238
          %s240 = scalar_lea.vmem [#allocation2], %s236
          // Predicated region
          $region60: #{sgc_forward.1} parent=36 // pred_check
            _
          $region61: #{sgc_forward.1} parent=36 // pred_check_branch
            %242 = sbr.rel target = $region63
          $region62: #{sgc_forward.1} parent=36 // pred_region
            %243 = sst [smem:[#allocation8]] [#allocation19]
            %244 = sst [smem:[#allocation9]] [#allocation18]
          $region63: #{sgc_forward.1} parent=36 // pred_fallthru
            _
          %246 = shalt.err (0)
          %s248 = sshll.u32 %s240, 4
          %s249 = int_to_ptr.vmem [resolvable:$true] %s248
          %251 = dma.hbm_to_vmem [thread:$0]  %s239, 16, %s249, [#allocation3]
          %s252 = sadd.s32 %s156, 6
          %s253 = sld [smem:[#allocation5 + %s252]]
          %s254 = smul.addr %s253, 16
          %s255 = scalar_lea.hbm %s1, %s254
          %s256 = scalar_lea.vmem [#allocation2], %s252
          // Predicated region
          $region64: #{sgc_forward.1} parent=36 // pred_check
            _
          $region65: #{sgc_forward.1} parent=36 // pred_check_branch
            %258 = sbr.rel target = $region67
          $region66: #{sgc_forward.1} parent=36 // pred_region
            %259 = sst [smem:[#allocation8]] [#allocation21]
            %260 = sst [smem:[#allocation9]] [#allocation20]
          $region67: #{sgc_forward.1} parent=36 // pred_fallthru
            _
          %262 = shalt.err (0)
          %s264 = sshll.u32 %s256, 4
          %s265 = int_to_ptr.vmem [resolvable:$true] %s264
          %267 = dma.hbm_to_vmem [thread:$0]  %s255, 16, %s265, [#allocation3]
          %s268 = sadd.s32 %s156, 7
          %s269 = sld [smem:[#allocation5 + %s268]]
          %s270 = smul.addr %s269, 16
          %s271 = scalar_lea.hbm %s1, %s270
          %s272 = scalar_lea.vmem [#allocation2], %s268
          // Predicated region
          $region68: #{sgc_forward.1} parent=36 // pred_check
            _
          $region69: #{sgc_forward.1} parent=36 // pred_check_branch
            %274 = sbr.rel target = $region71
          $region70: #{sgc_forward.1} parent=36 // pred_region
            %275 = sst [smem:[#allocation8]] [#allocation23]
            %276 = sst [smem:[#allocation9]] [#allocation22]
          $region71: #{sgc_forward.1} parent=36 // pred_fallthru
            _
          %278 = shalt.err (0)
          %s280 = sshll.u32 %s272, 4
          %s281 = int_to_ptr.vmem [resolvable:$true] %s280
          %283 = dma.hbm_to_vmem [thread:$0]  %s271, 16, %s281, [#allocation3]
        $region37: #{sgc_forward.1} parent=31 // loop_footer
          %s155 = sadd.s32 1, %s151
        $region38: #{sgc_forward.1} parent=31 // loop_footer_branch
          %150 = sbr.rel target = $region34
        $region39: #{sgc_forward.1} parent=31 // loop_exit
          _
      $region32: #{sgc_forward.1} parent=27 // pred_fallthru
        _
      %s284 = smul.u32 %s145, 256
      %s285 = scalar_lea.vmem [#allocation2], %s284
      %s286 = scalar_lea.sflag [#allocation3], %s145
      %s287 = smul.u32 256, 1
      %s288 = sshll.u32 %s287, 4
      %289 = dma.done %s286, %s288
      %s290 = sadd.s32 %s21, 1
      %p291 = scmp.lt.s32.totalorder %s290, 2
      // Predicated region
      $region72: #{sgc_forward.1} parent=27 // pred_check
        %p292 = pneg %p291
      $region73: #{sgc_forward.1} parent=27 // pred_check_branch
        %294 = sbr.rel (%p292) target = $region75
      $region74: #{sgc_forward.1} parent=27 // pred_region
        %s295 = ssub.s32 1, %s145
        %s296 = smul.u32 %s290, 256
        loop: start=0, step=1, limit=32
        $region76: #{sgc_forward.1} parent=74 // loop_pre_header
          _
        $region77: #{sgc_forward.1} parent=74 // loop_header
          %s298 = sphi 0, %s302
          %p299 = scmp.ge.s32.totalorder %s298, 32
        $region78: #{sgc_forward.1} parent=74 // loop_header_branch
          %301 = sbr.rel (%p299) target = $region82
        $region79: #{sgc_forward.1} parent=74 // loop_body
          %s303 = smul.u32 %s298, 8
          %s304 = sadd.s32 %s296, %s303
          %s305 = sld [smem:[#allocation5 + %s304]]
          %s306 = smul.addr %s305, 16
          %s307 = scalar_lea.hbm %s1, %s306
          %s308 = smul.u32 %s295, 256
          %s309 = sadd.s32 %s303, %s308
          %s310 = scalar_lea.vmem [#allocation2], %s309
          %s311 = scalar_lea.sflag [#allocation3], %s295
          // Predicated region
          $region83: #{sgc_forward.1} parent=79 // pred_check
            _
          $region84: #{sgc_forward.1} parent=79 // pred_check_branch
            %313 = sbr.rel target = $region86
          $region85: #{sgc_forward.1} parent=79 // pred_region
            %314 = sst [smem:[#allocation8]] [#allocation25]
            %315 = sst [smem:[#allocation9]] [#allocation24]
          $region86: #{sgc_forward.1} parent=79 // pred_fallthru
            _
          %317 = shalt.err (0)
          %s319 = sshll.u32 %s310, 4
          %s320 = int_to_ptr.vmem [resolvable:$true] %s319
          %322 = dma.hbm_to_vmem [thread:$0]  %s307, 16, %s320, %s311
          %s323 = sadd.s32 %s303, 1
          %s324 = sadd.s32 %s296, %s323
          %s325 = sld [smem:[#allocation5 + %s324]]
          %s326 = smul.addr %s325, 16
          %s327 = scalar_lea.hbm %s1, %s326
          %s328 = sadd.s32 %s323, %s308
          %s329 = scalar_lea.vmem [#allocation2], %s328
          // Predicated region
          $region87: #{sgc_forward.1} parent=79 // pred_check
            _
          $region88: #{sgc_forward.1} parent=79 // pred_check_branch
            %331 = sbr.rel target = $region90
          $region89: #{sgc_forward.1} parent=79 // pred_region
            %332 = sst [smem:[#allocation8]] [#allocation27]
            %333 = sst [smem:[#allocation9]] [#allocation26]
          $region90: #{sgc_forward.1} parent=79 // pred_fallthru
            _
          %335 = shalt.err (0)
          %s337 = sshll.u32 %s329, 4
          %s338 = int_to_ptr.vmem [resolvable:$true] %s337
          %340 = dma.hbm_to_vmem [thread:$0]  %s327, 16, %s338, %s311
          %s341 = sadd.s32 %s303, 2
          %s342 = sadd.s32 %s296, %s341
          %s343 = sld [smem:[#allocation5 + %s342]]
          %s344 = smul.addr %s343, 16
          %s345 = scalar_lea.hbm %s1, %s344
          %s346 = sadd.s32 %s341, %s308
          %s347 = scalar_lea.vmem [#allocation2], %s346
          // Predicated region
          $region91: #{sgc_forward.1} parent=79 // pred_check
            _
          $region92: #{sgc_forward.1} parent=79 // pred_check_branch
            %349 = sbr.rel target = $region94
          $region93: #{sgc_forward.1} parent=79 // pred_region
            %350 = sst [smem:[#allocation8]] [#allocation29]
            %351 = sst [smem:[#allocation9]] [#allocation28]
          $region94: #{sgc_forward.1} parent=79 // pred_fallthru
            _
          %353 = shalt.err (0)
          %s355 = sshll.u32 %s347, 4
          %s356 = int_to_ptr.vmem [resolvable:$true] %s355
          %358 = dma.hbm_to_vmem [thread:$0]  %s345, 16, %s356, %s311
          %s359 = sadd.s32 %s303, 3
          %s360 = sadd.s32 %s296, %s359
          %s361 = sld [smem:[#allocation5 + %s360]]
          %s362 = smul.addr %s361, 16
          %s363 = scalar_lea.hbm %s1, %s362
          %s364 = sadd.s32 %s359, %s308
          %s365 = scalar_lea.vmem [#allocation2], %s364
          // Predicated region
          $region95: #{sgc_forward.1} parent=79 // pred_check
            _
          $region96: #{sgc_forward.1} parent=79 // pred_check_branch
            %367 = sbr.rel target = $region98
          $region97: #{sgc_forward.1} parent=79 // pred_region
            %368 = sst [smem:[#allocation8]] [#allocation31]
            %369 = sst [smem:[#allocation9]] [#allocation30]
          $region98: #{sgc_forward.1} parent=79 // pred_fallthru
            _
          %371 = shalt.err (0)
          %s373 = sshll.u32 %s365, 4
          %s374 = int_to_ptr.vmem [resolvable:$true] %s373
          %376 = dma.hbm_to_vmem [thread:$0]  %s363, 16, %s374, %s311
          %s377 = sadd.s32 %s303, 4
          %s378 = sadd.s32 %s296, %s377
          %s379 = sld [smem:[#allocation5 + %s378]]
          %s380 = smul.addr %s379, 16
          %s381 = scalar_lea.hbm %s1, %s380
          %s382 = sadd.s32 %s377, %s308
          %s383 = scalar_lea.vmem [#allocation2], %s382
          // Predicated region
          $region99: #{sgc_forward.1} parent=79 // pred_check
            _
          $region100: #{sgc_forward.1} parent=79 // pred_check_branch
            %385 = sbr.rel target = $region102
          $region101: #{sgc_forward.1} parent=79 // pred_region
            %386 = sst [smem:[#allocation8]] [#allocation33]
            %387 = sst [smem:[#allocation9]] [#allocation32]
          $region102: #{sgc_forward.1} parent=79 // pred_fallthru
            _
          %389 = shalt.err (0)
          %s391 = sshll.u32 %s383, 4
          %s392 = int_to_ptr.vmem [resolvable:$true] %s391
          %394 = dma.hbm_to_vmem [thread:$0]  %s381, 16, %s392, %s311
          %s395 = sadd.s32 %s303, 5
          %s396 = sadd.s32 %s296, %s395
          %s397 = sld [smem:[#allocation5 + %s396]]
          %s398 = smul.addr %s397, 16
          %s399 = scalar_lea.hbm %s1, %s398
          %s400 = sadd.s32 %s395, %s308
          %s401 = scalar_lea.vmem [#allocation2], %s400
          // Predicated region
          $region103: #{sgc_forward.1} parent=79 // pred_check
            _
          $region104: #{sgc_forward.1} parent=79 // pred_check_branch
            %403 = sbr.rel target = $region106
          $region105: #{sgc_forward.1} parent=79 // pred_region
            %404 = sst [smem:[#allocation8]] [#allocation35]
            %405 = sst [smem:[#allocation9]] [#allocation34]
          $region106: #{sgc_forward.1} parent=79 // pred_fallthru
            _
          %407 = shalt.err (0)
          %s409 = sshll.u32 %s401, 4
          %s410 = int_to_ptr.vmem [resolvable:$true] %s409
          %412 = dma.hbm_to_vmem [thread:$0]  %s399, 16, %s410, %s311
          %s413 = sadd.s32 %s303, 6
          %s414 = sadd.s32 %s296, %s413
          %s415 = sld [smem:[#allocation5 + %s414]]
          %s416 = smul.addr %s415, 16
          %s417 = scalar_lea.hbm %s1, %s416
          %s418 = sadd.s32 %s413, %s308
          %s419 = scalar_lea.vmem [#allocation2], %s418
          // Predicated region
          $region107: #{sgc_forward.1} parent=79 // pred_check
            _
          $region108: #{sgc_forward.1} parent=79 // pred_check_branch
            %421 = sbr.rel target = $region110
          $region109: #{sgc_forward.1} parent=79 // pred_region
            %422 = sst [smem:[#allocation8]] [#allocation37]
            %423 = sst [smem:[#allocation9]] [#allocation36]
          $region110: #{sgc_forward.1} parent=79 // pred_fallthru
            _
          %425 = shalt.err (0)
          %s427 = sshll.u32 %s419, 4
          %s428 = int_to_ptr.vmem [resolvable:$true] %s427
          %430 = dma.hbm_to_vmem [thread:$0]  %s417, 16, %s428, %s311
          %s431 = sadd.s32 %s303, 7
          %s432 = sadd.s32 %s296, %s431
          %s433 = sld [smem:[#allocation5 + %s432]]
          %s434 = smul.addr %s433, 16
          %s435 = scalar_lea.hbm %s1, %s434
          %s436 = sadd.s32 %s431, %s308
          %s437 = scalar_lea.vmem [#allocation2], %s436
          // Predicated region
          $region111: #{sgc_forward.1} parent=79 // pred_check
            _
          $region112: #{sgc_forward.1} parent=79 // pred_check_branch
            %439 = sbr.rel target = $region114
          $region113: #{sgc_forward.1} parent=79 // pred_region
            %440 = sst [smem:[#allocation8]] [#allocation39]
            %441 = sst [smem:[#allocation9]] [#allocation38]
          $region114: #{sgc_forward.1} parent=79 // pred_fallthru
            _
          %443 = shalt.err (0)
          %s445 = sshll.u32 %s437, 4
          %s446 = int_to_ptr.vmem [resolvable:$true] %s445
          %448 = dma.hbm_to_vmem [thread:$0]  %s435, 16, %s446, %s311
        $region80: #{sgc_forward.1} parent=74 // loop_footer
          %s302 = sadd.s32 1, %s298
        $region81: #{sgc_forward.1} parent=74 // loop_footer_branch
          %297 = sbr.rel target = $region77
        $region82: #{sgc_forward.1} parent=74 // loop_exit
          _
      $region75: #{sgc_forward.1} parent=27 // pred_fallthru
        _
      %v449 = vld [vmem:[%s285] sm:$0xff]
      %v450 = vld [vmem:[%s285 + $0x8] sm:$0xff]
      %v451 = vld [vmem:[%s285 + $0x10] sm:$0xff]
      %v452 = vld [vmem:[%s285 + $0x18] sm:$0xff]
      %v453 = vld [vmem:[%s285 + $0x20] sm:$0xff]
      %v454 = vld [vmem:[%s285 + $0x28] sm:$0xff]
      %v455 = vld [vmem:[%s285 + $0x30] sm:$0xff]
      %v456 = vld [vmem:[%s285 + $0x38] sm:$0xff]
      %v457 = vld [vmem:[%s285 + $0x40] sm:$0xff]
      %v458 = vld [vmem:[%s285 + $0x48] sm:$0xff]
      %v459 = vld [vmem:[%s285 + $0x50] sm:$0xff]
      %v460 = vld [vmem:[%s285 + $0x58] sm:$0xff]
      %v461 = vld [vmem:[%s285 + $0x60] sm:$0xff]
      %v462 = vld [vmem:[%s285 + $0x68] sm:$0xff]
      %v463 = vld [vmem:[%s285 + $0x70] sm:$0xff]
      %v464 = vld [vmem:[%s285 + $0x78] sm:$0xff]
      %v465 = vld [vmem:[%s285 + $0x80] sm:$0xff]
      %v466 = vld [vmem:[%s285 + $0x88] sm:$0xff]
      %v467 = vld [vmem:[%s285 + $0x90] sm:$0xff]
      %v468 = vld [vmem:[%s285 + $0x98] sm:$0xff]
      %v469 = vld [vmem:[%s285 + $0xa0] sm:$0xff]
      %v470 = vld [vmem:[%s285 + $0xa8] sm:$0xff]
      %v471 = vld [vmem:[%s285 + $0xb0] sm:$0xff]
      %v472 = vld [vmem:[%s285 + $0xb8] sm:$0xff]
      %v473 = vld [vmem:[%s285 + $0xc0] sm:$0xff]
      %v474 = vld [vmem:[%s285 + $0xc8] sm:$0xff]
      %v475 = vld [vmem:[%s285 + $0xd0] sm:$0xff]
      %v476 = vld [vmem:[%s285 + $0xd8] sm:$0xff]
      %v477 = vld [vmem:[%s285 + $0xe0] sm:$0xff]
      %v478 = vld [vmem:[%s285 + $0xe8] sm:$0xff]
      %v479 = vld [vmem:[%s285 + $0xf0] sm:$0xff]
      %v480 = vld [vmem:[%s285 + $0xf8] sm:$0xff]
      %v481 = vpack.c.bf16 %v450, %v449
      %v482 = vpack.c.bf16 %v452, %v451
      %v483 = vpack.c.bf16 %v454, %v453
      %v484 = vpack.c.bf16 %v456, %v455
      %v485 = vpack.c.bf16 %v458, %v457
      %v486 = vpack.c.bf16 %v460, %v459
      %v487 = vpack.c.bf16 %v462, %v461
      %v488 = vpack.c.bf16 %v464, %v463
      %v489 = vpack.c.bf16 %v466, %v465
      %v490 = vpack.c.bf16 %v468, %v467
      %v491 = vpack.c.bf16 %v470, %v469
      %v492 = vpack.c.bf16 %v472, %v471
      %v493 = vpack.c.bf16 %v474, %v473
      %v494 = vpack.c.bf16 %v476, %v475
      %v495 = vpack.c.bf16 %v478, %v477
      %v496 = vpack.c.bf16 %v480, %v479
      %v497 = vld [vmem:[%s2] sm:$0xf]
      %v498 = vld [vmem:[%s2 + $0x4] sm:$0xf]
      %v499 = vld [vmem:[%s2 + $0x8] sm:$0xf]
      %v500 = vld [vmem:[%s2 + $0xc] sm:$0xf]
      %v501 = vld [vmem:[%s2 + $0x10] sm:$0xf]
      %v502 = vld [vmem:[%s2 + $0x14] sm:$0xf]
      %v503 = vld [vmem:[%s2 + $0x18] sm:$0xf]
      %v504 = vld [vmem:[%s2 + $0x1c] sm:$0xf]
      %v505 = vld [vmem:[%s2 + $0x20] sm:$0xf]
      %v506 = vld [vmem:[%s2 + $0x24] sm:$0xf]
      %v507 = vld [vmem:[%s2 + $0x28] sm:$0xf]
      %v508 = vld [vmem:[%s2 + $0x2c] sm:$0xf]
      %v509 = vld [vmem:[%s2 + $0x30] sm:$0xf]
      %v510 = vld [vmem:[%s2 + $0x34] sm:$0xf]
      %v511 = vld [vmem:[%s2 + $0x38] sm:$0xf]
      %v512 = vld [vmem:[%s2 + $0x3c] sm:$0xf]
      %v513 = vld [vmem:[%s3] sm:$0x1]
      %v515 = vlaneseq
      %v516 = vshrl.u32 %v515, 7
      %v517 = vsub.s32 0, %v516
      %v518 = vrot.slane %v513, %v517
      %v536 = vunpack.c.l.b16 %v497
      %v537 = vunpack.c.l.b16 %v498
      %v538 = vunpack.c.l.b16 %v499
      %v539 = vunpack.c.l.b16 %v500
      %v540 = vunpack.c.l.b16 %v501
      %v541 = vunpack.c.l.b16 %v502
      %v542 = vunpack.c.l.b16 %v503
      %v543 = vunpack.c.l.b16 %v504
      %v544 = vunpack.c.l.b16 %v505
      %v545 = vunpack.c.l.b16 %v506
      %v546 = vunpack.c.l.b16 %v507
      %v547 = vunpack.c.l.b16 %v508
      %v548 = vunpack.c.l.b16 %v509
      %v549 = vunpack.c.l.b16 %v510
      %v550 = vunpack.c.l.b16 %v511
      %v551 = vunpack.c.l.b16 %v512
      %v552 = vpack.c.b16 %v537, %v536
      %v553 = vpack.c.b16 %v539, %v538
      %v554 = vpack.c.b16 %v541, %v540
      %v555 = vpack.c.b16 %v543, %v542
      %v556 = vpack.c.b16 %v545, %v544
      %v557 = vpack.c.b16 %v547, %v546
      %v558 = vpack.c.b16 %v549, %v548
      %v559 = vpack.c.b16 %v551, %v550
      %568 = vmatprep.subr.bf16.mxu0 0
      %569 = vmatpush1.bf16.msra.mxu0 %v559
      %570 = vmatprep.subr.bf16.mxu0 0
      %571 = vmatpush1.bf16.msra.mxu0 %v558
      %572 = vmatprep.subr.bf16.mxu0 0
      %573 = vmatpush1.bf16.msra.mxu0 %v557
      %574 = vmatprep.subr.bf16.mxu0 0
      %575 = vmatpush1.bf16.msra.mxu0 %v556
      %576 = vmatprep.subr.bf16.mxu0 0
      %577 = vmatpush1.bf16.msra.mxu0 %v555
      %578 = vmatprep.subr.bf16.mxu0 0
      %579 = vmatpush1.bf16.msra.mxu0 %v554
      %580 = vmatprep.subr.bf16.mxu0 0
      %581 = vmatpush1.bf16.msra.mxu0 %v553
      %582 = vmatprep.subr.bf16.mxu0 0
      %583 = vmatpush1.bf16.msra.mxu0 %v552
      %584 = vmatprep.subr.bf16.mxu0 0
      %585 = vmatpush2.bf16.msra.mxu0 0
      %586 = vmatprep.subr.bf16.mxu0 0
      %587 = vmatpush2.bf16.msra.mxu0 0
      %588 = vmatprep.subr.bf16.mxu0 0
      %589 = vmatpush2.bf16.msra.mxu0 0
      %590 = vmatprep.subr.bf16.mxu0 0
      %591 = vmatpush2.bf16.msra.mxu0 0
      %592 = vmatprep.subr.bf16.mxu0 0
      %593 = vmatpush2.bf16.msra.mxu0 0
      %594 = vmatprep.subr.bf16.mxu0 0
      %595 = vmatpush2.bf16.msra.mxu0 0
      %596 = vmatprep.subr.bf16.mxu0 0
      %597 = vmatpush2.bf16.msra.mxu0 0
      %598 = vmatprep.subr.bf16.mxu0 0
      %599 = vmatpush2.bf16.msra.mxu0 0
      %600 = vmatprep.mubr.bf16.mxu0 0
      %601 = vmatmul.mubr.bf16.gmra.mxu0 %v481
      %v602 = vpop.f32.mrf.mxu0
      %v603 = vadd.f32 %v518, %v602
      %v604 = vpop.f32.mrf.mxu0
      %v605 = vpop.f32.mrf.mxu0
      %v606 = vadd.f32 %v518, %v605
      %v607 = vpop.f32.mrf.mxu0
      %608 = vmatprep.mubr.bf16.mxu0 0
      %609 = vmatmul.mubr.bf16.gmra.mxu0 %v482
      %v610 = vpop.f32.mrf.mxu0
      %v611 = vadd.f32 %v518, %v610
      %v612 = vpop.f32.mrf.mxu0
      %v613 = vpop.f32.mrf.mxu0
      %v614 = vadd.f32 %v518, %v613
      %v615 = vpop.f32.mrf.mxu0
      %616 = vmatprep.mubr.bf16.mxu0 0
      %617 = vmatmul.mubr.bf16.gmra.mxu0 %v483
      %v618 = vpop.f32.mrf.mxu0
      %v619 = vadd.f32 %v518, %v618
      %v620 = vpop.f32.mrf.mxu0
      %v621 = vpop.f32.mrf.mxu0
      %v622 = vadd.f32 %v518, %v621
      %v623 = vpop.f32.mrf.mxu0
      %624 = vmatprep.mubr.bf16.mxu0 0
      %625 = vmatmul.mubr.bf16.gmra.mxu0 %v484
      %v626 = vpop.f32.mrf.mxu0
      %v627 = vadd.f32 %v518, %v626
      %v628 = vpop.f32.mrf.mxu0
      %v629 = vpop.f32.mrf.mxu0
      %v630 = vadd.f32 %v518, %v629
      %v631 = vpop.f32.mrf.mxu0
      %632 = vmatprep.mubr.bf16.mxu0 0
      %633 = vmatmul.mubr.bf16.gmra.mxu0 %v485
      %v634 = vpop.f32.mrf.mxu0
      %v635 = vadd.f32 %v518, %v634
      %v636 = vpop.f32.mrf.mxu0
      %v637 = vpop.f32.mrf.mxu0
      %v638 = vadd.f32 %v518, %v637
      %v639 = vpop.f32.mrf.mxu0
      %640 = vmatprep.mubr.bf16.mxu0 0
      %641 = vmatmul.mubr.bf16.gmra.mxu0 %v486
      %v642 = vpop.f32.mrf.mxu0
      %v643 = vadd.f32 %v518, %v642
      %v644 = vpop.f32.mrf.mxu0
      %v645 = vpop.f32.mrf.mxu0
      %v646 = vadd.f32 %v518, %v645
      %v647 = vpop.f32.mrf.mxu0
      %648 = vmatprep.mubr.bf16.mxu0 0
      %649 = vmatmul.mubr.bf16.gmra.mxu0 %v487
      %v650 = vpop.f32.mrf.mxu0
      %v651 = vadd.f32 %v518, %v650
      %v652 = vpop.f32.mrf.mxu0
      %v653 = vpop.f32.mrf.mxu0
      %v654 = vadd.f32 %v518, %v653
      %v655 = vpop.f32.mrf.mxu0
      %656 = vmatprep.mubr.bf16.mxu0 0
      %657 = vmatmul.mubr.bf16.gmra.mxu0 %v488
      %v658 = vpop.f32.mrf.mxu0
      %v659 = vadd.f32 %v518, %v658
      %v660 = vpop.f32.mrf.mxu0
      %v661 = vpop.f32.mrf.mxu0
      %v662 = vadd.f32 %v518, %v661
      %v663 = vpop.f32.mrf.mxu0
      %664 = vmatprep.mubr.bf16.mxu0 0
      %665 = vmatmul.mubr.bf16.gmra.mxu0 %v489
      %v666 = vpop.f32.mrf.mxu0
      %v667 = vadd.f32 %v518, %v666
      %v668 = vpop.f32.mrf.mxu0
      %v669 = vpop.f32.mrf.mxu0
      %v670 = vadd.f32 %v518, %v669
      %v671 = vpop.f32.mrf.mxu0
      %672 = vmatprep.mubr.bf16.mxu0 0
      %673 = vmatmul.mubr.bf16.gmra.mxu0 %v490
      %v674 = vpop.f32.mrf.mxu0
      %v675 = vadd.f32 %v518, %v674
      %v676 = vpop.f32.mrf.mxu0
      %v677 = vpop.f32.mrf.mxu0
      %v678 = vadd.f32 %v518, %v677
      %v679 = vpop.f32.mrf.mxu0
      %680 = vmatprep.mubr.bf16.mxu0 0
      %681 = vmatmul.mubr.bf16.gmra.mxu0 %v491
      %v682 = vpop.f32.mrf.mxu0
      %v683 = vadd.f32 %v518, %v682
      %v684 = vpop.f32.mrf.mxu0
      %v685 = vpop.f32.mrf.mxu0
      %v686 = vadd.f32 %v518, %v685
      %v687 = vpop.f32.mrf.mxu0
      %688 = vmatprep.mubr.bf16.mxu0 0
      %689 = vmatmul.mubr.bf16.gmra.mxu0 %v492
      %v690 = vpop.f32.mrf.mxu0
      %v691 = vadd.f32 %v518, %v690
      %v692 = vpop.f32.mrf.mxu0
      %v693 = vpop.f32.mrf.mxu0
      %v694 = vadd.f32 %v518, %v693
      %v695 = vpop.f32.mrf.mxu0
      %696 = vmatprep.mubr.bf16.mxu0 0
      %697 = vmatmul.mubr.bf16.gmra.mxu0 %v493
      %v698 = vpop.f32.mrf.mxu0
      %v699 = vadd.f32 %v518, %v698
      %v700 = vpop.f32.mrf.mxu0
      %v701 = vpop.f32.mrf.mxu0
      %v702 = vadd.f32 %v518, %v701
      %v703 = vpop.f32.mrf.mxu0
      %704 = vmatprep.mubr.bf16.mxu0 0
      %705 = vmatmul.mubr.bf16.gmra.mxu0 %v494
      %v706 = vpop.f32.mrf.mxu0
      %v707 = vadd.f32 %v518, %v706
      %v708 = vpop.f32.mrf.mxu0
      %v709 = vpop.f32.mrf.mxu0
      %v710 = vadd.f32 %v518, %v709
      %v711 = vpop.f32.mrf.mxu0
      %712 = vmatprep.mubr.bf16.mxu0 0
      %713 = vmatmul.mubr.bf16.gmra.mxu0 %v495
      %v714 = vpop.f32.mrf.mxu0
      %v715 = vadd.f32 %v518, %v714
      %v716 = vpop.f32.mrf.mxu0
      %v717 = vpop.f32.mrf.mxu0
      %v718 = vadd.f32 %v518, %v717
      %v719 = vpop.f32.mrf.mxu0
      %720 = vmatprep.mubr.bf16.mxu0 0
      %721 = vmatmul.mubr.bf16.gmra.mxu0 %v496
      %v722 = vpop.f32.mrf.mxu0
      %v723 = vadd.f32 %v518, %v722
      %v724 = vpop.f32.mrf.mxu0
      %v725 = vpop.f32.mrf.mxu0
      %v726 = vadd.f32 %v518, %v725
      %v727 = vpop.f32.mrf.mxu0
      %728 = vdwg.mxu0
      %729 = vst [vmem:[%s131] sm:$0xff] %v603
      %730 = vst [vmem:[%s131 + $0x8] sm:$0xff] %v606
      %731 = vst [vmem:[%s131 + $0x10] sm:$0xff] %v611
      %732 = vst [vmem:[%s131 + $0x18] sm:$0xff] %v614
      %733 = vst [vmem:[%s131 + $0x20] sm:$0xff] %v619
      %734 = vst [vmem:[%s131 + $0x28] sm:$0xff] %v622
      %735 = vst [vmem:[%s131 + $0x30] sm:$0xff] %v627
      %736 = vst [vmem:[%s131 + $0x38] sm:$0xff] %v630
      %737 = vst [vmem:[%s131 + $0x40] sm:$0xff] %v635
      %738 = vst [vmem:[%s131 + $0x48] sm:$0xff] %v638
      %739 = vst [vmem:[%s131 + $0x50] sm:$0xff] %v643
      %740 = vst [vmem:[%s131 + $0x58] sm:$0xff] %v646
      %741 = vst [vmem:[%s131 + $0x60] sm:$0xff] %v651
      %742 = vst [vmem:[%s131 + $0x68] sm:$0xff] %v654
      %743 = vst [vmem:[%s131 + $0x70] sm:$0xff] %v659
      %744 = vst [vmem:[%s131 + $0x78] sm:$0xff] %v662
      %745 = vst [vmem:[%s131 + $0x80] sm:$0xff] %v667
      %746 = vst [vmem:[%s131 + $0x88] sm:$0xff] %v670
      %747 = vst [vmem:[%s131 + $0x90] sm:$0xff] %v675
      %748 = vst [vmem:[%s131 + $0x98] sm:$0xff] %v678
      %749 = vst [vmem:[%s131 + $0xa0] sm:$0xff] %v683
      %750 = vst [vmem:[%s131 + $0xa8] sm:$0xff] %v686
      %751 = vst [vmem:[%s131 + $0xb0] sm:$0xff] %v691
      %752 = vst [vmem:[%s131 + $0xb8] sm:$0xff] %v694
      %753 = vst [vmem:[%s131 + $0xc0] sm:$0xff] %v699
      %754 = vst [vmem:[%s131 + $0xc8] sm:$0xff] %v702
      %755 = vst [vmem:[%s131 + $0xd0] sm:$0xff] %v707
      %756 = vst [vmem:[%s131 + $0xd8] sm:$0xff] %v710
      %757 = vst [vmem:[%s131 + $0xe0] sm:$0xff] %v715
      %758 = vst [vmem:[%s131 + $0xe8] sm:$0xff] %v718
      %759 = vst [vmem:[%s131 + $0xf0] sm:$0xff] %v723
      %760 = vst [vmem:[%s131 + $0xf8] sm:$0xff] %v726
      %s761 = smul.u32 32, %s21
      %p762 = scmp.lt.s32.totalorder %s761, 63
      %s763 = scalar_select %p762, %s761, 63
      %s764 = smul.addr %s763, 8
      %s765 = scalar_lea.vmem %s4, %s764
      // Predicated region
      $region115: #{sgc_forward.1} parent=27 // pred_check
        %p766 = pneg %p81
      $region116: #{sgc_forward.1} parent=27 // pred_check_branch
        %768 = sbr.rel (%p766) target = $region118
      $region117: #{sgc_forward.1} parent=27 // pred_region
        %s769 = smul.u32 32, %s21
      $region118: #{sgc_forward.1} parent=27 // pred_fallthru
        _
    $region28: #{sgc_forward.1} parent=5 // pred_fallthru
      _
    %p770 = scmp.le.s32.totalorder 2, %s16
    // Predicated region
    $region119: #{sgc_forward.1} parent=5 // pred_check
      %p771 = pneg %p770
    $region120: #{sgc_forward.1} parent=5 // pred_check_branch
      %773 = sbr.rel (%p771) target = $region122
    $region121: #{sgc_forward.1} parent=5 // pred_region
      %s774 = ssub.s32 %s16, 2
      // Predicated region
      $region123: #{sgc_forward.1} parent=121 // pred_check
        %p775 = pneg %p87
      $region124: #{sgc_forward.1} parent=121 // pred_check_branch
        %777 = sbr.rel (%p775) target = $region126
      $region125: #{sgc_forward.1} parent=121 // pred_region
        %s778 = smul.u32 32, %s22
        %p779 = scmp.lt.s32.totalorder %s778, 63
        %s780 = scalar_select %p779, %s778, 63
        %s781 = smul.addr %s780, 8
        %s782 = scalar_lea.vmem %s4, %s781
      $region126: #{sgc_forward.1} parent=121 // pred_fallthru
        _
    $region122: #{sgc_forward.1} parent=5 // pred_fallthru
      _
  $region6: #{sgc_forward.1} parent=0 // loop_footer
    %s20 = sadd.s32 1, %s16
  $region7: #{sgc_forward.1} parent=0 // loop_footer_branch
    %15 = sbr.rel target = $region3
  $region8: #{sgc_forward.1} parent=0 // loop_exit
    _
  %783 = vsyncmov [#allocation3]
  %s784 = vpop.sfrf %783
  %p785 = scmp.eq.s32.totalorder %s784, 0
  %p786 = pneg %p785
  %788 = shalt.err (%p786)
  %s789 = scalar_lea.sflag [#allocation3], 1
  %790 = vsyncmov %s789
  %s791 = vpop.sfrf %790
  %p792 = scmp.eq.s32.totalorder %s791, 0
  %p793 = pneg %p792
  %795 = shalt.err (%p793)

</llo_original>
